<compile_context>
chip_gen: v5e
topology: v5e:2x2
jax: 0.10.0
libtpu: 0.0.40
codegen_flags: <defaults>
</compile_context>

<pallas_src>
import functools
import math

import jax
import jax.numpy as jnp
from jax.experimental import pallas as pl
from jax.experimental.pallas import tpu as pltpu

# ---------------- config (small, BERT-like) ----------------
VOCAB = 100
MAX_POS = 16
TYPE_VOCAB = 2
HIDDEN = 32
NUM_HEADS = 2
HEAD_DIM = HIDDEN // NUM_HEADS
INTERMEDIATE = 64
NUM_LAYERS = 2
LN_EPS = 1e-12

assert NUM_LAYERS >= 2


# ---------------- in-kernel helpers ----------------
def _layernorm(x, g, b):
    mu = jnp.mean(x, axis=-1, keepdims=True)
    var = jnp.mean((x - mu) ** 2, axis=-1, keepdims=True)
    return (x - mu) * jax.lax.rsqrt(var + LN_EPS) * g + b


def _gelu(x):
    # TODO(synk): HF BERT default is exact erf-GELU; tanh approximation used
    # here for guaranteed Mosaic/EUP lowering (numerically ~1e-3 close).
    return 0.5 * x * (1.0 + jnp.tanh(0.7978845608028654 * (x + 0.044715 * x * x * x)))


def _bf16(x):
    return x.astype(jnp.bfloat16)


def _attention(q, k, v, add_mask):
    """Per-head 2-D attention on flat (rows, H) slabs.

    q: (Rq, H) f32; k, v: (Rk, H) f32; add_mask: (Rq, Rk) additive f32.
    Head h occupies lanes [h*HD, (h+1)*HD), so per-head access is a plain lane
    slice; scores/context are 2-D MXU matmuls (no 3-D reshapes/relayouts).
    """
    ctx_heads = []
    for h in range(NUM_HEADS):
        sl = slice(h * HEAD_DIM, (h + 1) * HEAD_DIM)
        s = jax.lax.dot_general(
            _bf16(q[:, sl]), _bf16(k[:, sl]),
            (((1,), (1,)), ((), ())),                     # contract head dims ("nt")
            preferred_element_type=jnp.float32) + add_mask
        s = s - jnp.max(s, axis=-1, keepdims=True)
        p = jnp.exp(s)
        p = p * pl.reciprocal(jnp.sum(p, axis=-1, keepdims=True), approx=True)
        ctx_heads.append(jnp.dot(_bf16(p), _bf16(v[:, sl]),
                                 preferred_element_type=jnp.float32))
    return jnp.concatenate(ctx_heads, axis=-1)            # lane concat -> (Rq, H)


# ---------------- fused Pallas kernel ----------------
def finbert_fused_kernel(B, S,
                         x_ref, mask_ref, clsmask_ref, embg_ref, embb_ref,
                         wqkv_ref, bqkv_ref,
                         wq_l_ref, bq_l_ref, wkv_l_ref, bkv_l_ref,
                         wo_ref, bo_ref, ln1g_ref, ln1b_ref,
                         w1_ref, b1_ref, w2_ref, b2_ref, ln2g_ref, ln2b_ref,
                         regw_ref, regb_ref,
                         o_ref, h_scr):
    H = HIDDEN
    mask = mask_ref[...]          # (B*S, B*S) block-diag additive mask
    cls_mask = clsmask_ref[...]   # (B,   B*S) CLS-query additive mask

    # Embedding LayerNorm over the flattened (B*S, H) slab.
    h = _layernorm(x_ref[...], embg_ref[...], embb_ref[...])

    # ---- layers 0 .. L-2: full-row processing (statically unrolled) ----
    for l in range(NUM_LAYERS - 1):
        qkv = jnp.dot(_bf16(h), wqkv_ref[l],              # weights already bf16
                      preferred_element_type=jnp.float32) + bqkv_ref[l]
        ctx = _attention(qkv[:, 0:H], qkv[:, H:2 * H], qkv[:, 2 * H:3 * H], mask)
        attn = jnp.dot(_bf16(ctx), wo_ref[l],
                       preferred_element_type=jnp.float32) + bo_ref[l]
        h1 = _layernorm(h + attn, ln1g_ref[l], ln1b_ref[l])        # post-LN #1
        ff = _gelu(jnp.dot(_bf16(h1), w1_ref[l],
                           preferred_element_type=jnp.float32) + b1_ref[l])
        ff = jnp.dot(_bf16(ff), w2_ref[l],
                     preferred_element_type=jnp.float32) + b2_ref[l]
        h = _layernorm(h1 + ff, ln2g_ref[l], ln2b_ref[l])          # post-LN #2

    # ---- last layer: only the B CLS query rows feed the regressor ----
    LL = NUM_LAYERS - 1
    h_scr[...] = h
    h_cls = h_scr[pl.ds(0, B, stride=S), :]               # strided CLS gather (no MXU)

    kv = jnp.dot(_bf16(h), wkv_l_ref[...],                # K/V for all rows
                 preferred_element_type=jnp.float32) + bkv_l_ref[...]
    q_cls = jnp.dot(_bf16(h_cls), wq_l_ref[...],          # Q only for CLS rows
                    preferred_element_type=jnp.float32) + bq_l_ref[...]
    ctx = _attention(q_cls, kv[:, 0:H], kv[:, H:2 * H], cls_mask)
    attn = jnp.dot(_bf16(ctx), wo_ref[LL],
                   preferred_element_type=jnp.float32) + bo_ref[LL]
    h1 = _layernorm(h_cls + attn, ln1g_ref[LL], ln1b_ref[LL])
    ff = _gelu(jnp.dot(_bf16(h1), w1_ref[LL],
                       preferred_element_type=jnp.float32) + b1_ref[LL])
    ff = jnp.dot(_bf16(ff), w2_ref[LL],
                 preferred_element_type=jnp.float32) + b2_ref[LL]
    h_cls = _layernorm(h1 + ff, ln2g_ref[LL], ln2b_ref[LL])

    # Regressor Linear(H, 1): VPU multiply + lane reduce (no MXU on the tail).
    out = jnp.sum(h_cls * regw_ref[...], axis=-1, keepdims=True) + regb_ref[...]
    o_ref[...] = out.astype(o_ref.dtype)


# ---------------- one-time weight preprocessing (hoisted off the fwd path) ----------------
def prepare_params(params):
    H = HIDDEN
    scale = 1.0 / math.sqrt(HEAD_DIM)   # folded into Q weights/bias ONCE here
    lp = params["layers"]
    bf = jnp.bfloat16

    return {
        "word_emb": params["word_emb"],
        "pos_emb": params["pos_emb"],
        "type_emb": params["type_emb"],
        "emb_ln_g": params["emb_ln_g"].reshape(1, H),
        "emb_ln_b": params["emb_ln_b"].reshape(1, H),
        # layers 0..L-2: fused q|k|v columns, bf16 weights, f32 biases.
        "wqkv": jnp.stack([jnp.concatenate([p["wq"] * scale, p["wk"], p["wv"]], axis=1)
                           for p in lp[:-1]]).astype(bf),                 # (L-1, H, 3H)
        "bqkv": jnp.stack([jnp.concatenate([p["bq"] * scale, p["bk"], p["bv"]])[None, :]
                           for p in lp[:-1]]),                            # (L-1, 1, 3H)
        # last layer: separate Q (CLS rows only) and fused K|V (all rows).
        "wq_last": (lp[-1]["wq"] * scale).astype(bf),                     # (H, H)
        "bq_last": (lp[-1]["bq"] * scale).reshape(1, H),                  # (1, H)
        "wkv_last": jnp.concatenate([lp[-1]["wk"], lp[-1]["wv"]], axis=1).astype(bf),
        "bkv_last": jnp.concatenate([lp[-1]["bk"], lp[-1]["bv"]]).reshape(1, 2 * H),
        "wo": jnp.stack([p["wo"] for p in lp]).astype(bf),                # (L, H, H)
        "bo": jnp.stack([p["bo"][None, :] for p in lp]),                  # (L, 1, H)
        "ln1g": jnp.stack([p["ln1_g"][None, :] for p in lp]),
        "ln1b": jnp.stack([p["ln1_b"][None, :] for p in lp]),
        "w1": jnp.stack([p["w1"] for p in lp]).astype(bf),                # (L, H, I)
        "b1": jnp.stack([p["b1"][None, :] for p in lp]),                  # (L, 1, I)
        "w2": jnp.stack([p["w2"] for p in lp]).astype(bf),                # (L, I, H)
        "b2": jnp.stack([p["b2"][None, :] for p in lp]),                  # (L, 1, H)
        "ln2g": jnp.stack([p["ln2_g"][None, :] for p in lp]),
        "ln2b": jnp.stack([p["ln2_b"][None, :] for p in lp]),
        "reg_w": params["reg_w"].reshape(1, H),
        "reg_b": params["reg_b"].reshape(1, 1),
    }


# ---------------- forward wrapper ----------------
@jax.jit
def finbert_regressor_forward(prepped, input_ids, attention_mask):
    B, S = input_ids.shape
    H = HIDDEN

    # Embedding-table gather is plain-JAX glue; everything downstream is fused.
    # TODO(synk): token_type_ids hard-coded to segment 0 (as in typical usage).
    emb = (jnp.take(prepped["word_emb"], input_ids, axis=0)
           + prepped["pos_emb"][None, :S, :]
           + prepped["type_emb"][0][None, None, :])
    x = emb.reshape(B * S, H).astype(jnp.float32)

    # Additive masks: block-diagonal (B*S, B*S) for full layers (cross-batch
    # keys and padded keys -> -1e9) and (B, B*S) for the CLS-only last layer.
    key_ok = attention_mask.reshape(B * S).astype(jnp.float32) > 0.5
    key_batch = jnp.arange(B * S, dtype=jnp.int32) // S
    same = key_batch[:, None] == key_batch[None, :]
    full_mask = jnp.where(same & key_ok[None, :], 0.0, -1e9).astype(jnp.float32)
    cls_same = jnp.arange(B, dtype=jnp.int32)[:, None] == key_batch[None, :]
    cls_mask = jnp.where(cls_same & key_ok[None, :], 0.0, -1e9).astype(jnp.float32)

    vmem = pl.BlockSpec(memory_space=pltpu.MemorySpace.VMEM)
    out = pl.pallas_call(
        functools.partial(finbert_fused_kernel, B, S),
        out_shape=jax.ShapeDtypeStruct((B, 1), jnp.float32),
        in_specs=[vmem] * 23,
        out_specs=vmem,
        scratch_shapes=[pltpu.VMEM((B * S, H), jnp.float32)],   # h staging for CLS gather
        compiler_params=pltpu.CompilerParams(vmem_limit_bytes=16 * 1024 * 1024),
    )(x, full_mask, cls_mask,
      prepped["emb_ln_g"], prepped["emb_ln_b"],
      prepped["wqkv"], prepped["bqkv"],
      prepped["wq_last"], prepped["bq_last"],
      prepped["wkv_last"], prepped["bkv_last"],
      prepped["wo"], prepped["bo"], prepped["ln1g"], prepped["ln1b"],
      prepped["w1"], prepped["b1"], prepped["w2"], prepped["b2"],
      prepped["ln2g"], prepped["ln2b"],
      prepped["reg_w"], prepped["reg_b"])
    return out[:, 0]                                       # .squeeze(-1)


# ---------------- deterministic synthetic parameters ----------------
def init_params(key):
    keys = jax.random.split(key, 8 + NUM_LAYERS)
    std = 0.02

    def n(k, shape):
        return jax.random.normal(k, shape, jnp.float32) * std

    params = {
        "word_emb": n(keys[0], (VOCAB, HIDDEN)),
        "pos_emb": n(keys[1], (MAX_POS, HIDDEN)),
        "type_emb": n(keys[2], (TYPE_VOCAB, HIDDEN)),
        "emb_ln_g": jnp.ones((HIDDEN,), jnp.float32),
        "emb_ln_b": jnp.zeros((HIDDEN,), jnp.float32),
        "reg_w": n(keys[3], (HIDDEN, 1)),       # nn.Linear(hidden, 1) weight (stored transposed)
        "reg_b": jnp.zeros((1,), jnp.float32),  # nn.Linear(hidden, 1) bias
        "layers": [],
    }
    for l in range(NUM_LAYERS):
        lk = jax.random.split(keys[4 + l], 6)
        params["layers"].append({
            "wq": n(lk[0], (HIDDEN, HIDDEN)), "bq": jnp.zeros((HIDDEN,), jnp.float32),
            "wk": n(lk[1], (HIDDEN, HIDDEN)), "bk": jnp.zeros((HIDDEN,), jnp.float32),
            "wv": n(lk[2], (HIDDEN, HIDDEN)), "bv": jnp.zeros((HIDDEN,), jnp.float32),
            "wo": n(lk[3], (HIDDEN, HIDDEN)), "bo": jnp.zeros((HIDDEN,), jnp.float32),
            "ln1_g": jnp.ones((HIDDEN,), jnp.float32),
            "ln1_b": jnp.zeros((HIDDEN,), jnp.float32),
            "w1": n(lk[4], (HIDDEN, INTERMEDIATE)),
            "b1": jnp.zeros((INTERMEDIATE,), jnp.float32),
            "w2": n(lk[5], (INTERMEDIATE, HIDDEN)),
            "b2": jnp.zeros((HIDDEN,), jnp.float32),
            "ln2_g": jnp.ones((HIDDEN,), jnp.float32),
            "ln2_b": jnp.zeros((HIDDEN,), jnp.float32),
        })
    return params


if __name__ == "__main__":
    key = jax.random.PRNGKey(0)
    k_ids, k_params = jax.random.split(key, 2)

    B, S = 2, 8
    input_ids = jax.random.randint(k_ids, (B, S), 0, VOCAB, dtype=jnp.int32)
    attention_mask = jnp.ones((B, S), dtype=jnp.int32)
    attention_mask = attention_mask.at[1, 6:].set(0)   # padded tail in batch 1

    params = init_params(k_params)
    prepped = prepare_params(params)                   # one-time, off the fwd path

    out = finbert_regressor_forward(prepped, input_ids, attention_mask)
    jax.block_until_ready(out)

    assert out.shape == (B,), out.shape
    assert out.dtype == jnp.float32
    assert bool(jnp.all(jnp.isfinite(out)))
    print("KERNEL_OK")
</pallas_src>

<mosaic_0001>
module attributes {stable_mosaic.version = 11 : i64} {
  func.func @finbert_fused_kernel(%arg0: memref<16x32xf32, #tpu.memory_space<vmem>>, %arg1: memref<16x16xf32, #tpu.memory_space<vmem>>, %arg2: memref<2x16xf32, #tpu.memory_space<vmem>>, %arg3: memref<1x32xf32, #tpu.memory_space<vmem>>, %arg4: memref<1x32xf32, #tpu.memory_space<vmem>>, %arg5: memref<1x32x96xbf16, #tpu.memory_space<vmem>>, %arg6: memref<1x1x96xf32, #tpu.memory_space<vmem>>, %arg7: memref<32x32xbf16, #tpu.memory_space<vmem>>, %arg8: memref<1x32xf32, #tpu.memory_space<vmem>>, %arg9: memref<32x64xbf16, #tpu.memory_space<vmem>>, %arg10: memref<1x64xf32, #tpu.memory_space<vmem>>, %arg11: memref<2x32x32xbf16, #tpu.memory_space<vmem>>, %arg12: memref<2x1x32xf32, #tpu.memory_space<vmem>>, %arg13: memref<2x1x32xf32, #tpu.memory_space<vmem>>, %arg14: memref<2x1x32xf32, #tpu.memory_space<vmem>>, %arg15: memref<2x32x64xbf16, #tpu.memory_space<vmem>>, %arg16: memref<2x1x64xf32, #tpu.memory_space<vmem>>, %arg17: memref<2x64x32xbf16, #tpu.memory_space<vmem>>, %arg18: memref<2x1x32xf32, #tpu.memory_space<vmem>>, %arg19: memref<2x1x32xf32, #tpu.memory_space<vmem>>, %arg20: memref<2x1x32xf32, #tpu.memory_space<vmem>>, %arg21: memref<1x32xf32, #tpu.memory_space<vmem>>, %arg22: memref<1x1xf32, #tpu.memory_space<vmem>>, %arg23: memref<2x1xf32, #tpu.memory_space<vmem>>, %arg24: memref<16x32xf32, #tpu.memory_space<vmem>>) attributes {dimension_semantics = [], scalar_prefetch = 0 : i64, scratch_operands = 1 : i64, tpu.core_type = #tpu.core_type<tc>} {
    %c0 = arith.constant 0 : index
    %c0_0 = arith.constant 0 : index
    %0 = vector.load %arg1[%c0, %c0_0] : memref<16x16xf32, #tpu.memory_space<vmem>>, vector<16x16xf32>
    %c0_1 = arith.constant 0 : index
    %c0_2 = arith.constant 0 : index
    %1 = vector.load %arg2[%c0_1, %c0_2] : memref<2x16xf32, #tpu.memory_space<vmem>>, vector<2x16xf32>
    %c0_3 = arith.constant 0 : index
    %c0_4 = arith.constant 0 : index
    %2 = vector.load %arg0[%c0_3, %c0_4] : memref<16x32xf32, #tpu.memory_space<vmem>>, vector<16x32xf32>
    %c0_5 = arith.constant 0 : index
    %c0_6 = arith.constant 0 : index
    %3 = vector.load %arg3[%c0_5, %c0_6] : memref<1x32xf32, #tpu.memory_space<vmem>>, vector<1x32xf32>
    %c0_7 = arith.constant 0 : index
    %c0_8 = arith.constant 0 : index
    %4 = vector.load %arg4[%c0_7, %c0_8] : memref<1x32xf32, #tpu.memory_space<vmem>>, vector<1x32xf32>
    %cst = arith.constant dense<0.000000e+00> : vector<16xf32>
    %5 = vector.multi_reduction <add>, %2, %cst [1] : vector<16x32xf32> to vector<16xf32>
    %6 = vector.shape_cast %5 : vector<16xf32> to vector<16x1xf32>
    %cst_9 = arith.constant 3.200000e+01 : f32
    %7 = vector.broadcast %cst_9 : f32 to vector<16x1xf32>
    %8 = arith.divf %6, %7 : vector<16x1xf32>
    %9 = vector.broadcast %8 : vector<16x1xf32> to vector<16x32xf32>
    %10 = arith.subf %2, %9 : vector<16x32xf32>
    %11 = arith.mulf %10, %10 : vector<16x32xf32>
    %cst_10 = arith.constant dense<0.000000e+00> : vector<16xf32>
    %12 = vector.multi_reduction <add>, %11, %cst_10 [1] : vector<16x32xf32> to vector<16xf32>
    %13 = vector.shape_cast %12 : vector<16xf32> to vector<16x1xf32>
    %cst_11 = arith.constant 3.200000e+01 : f32
    %14 = vector.broadcast %cst_11 : f32 to vector<16x1xf32>
    %15 = arith.divf %13, %14 : vector<16x1xf32>
    %16 = vector.broadcast %8 : vector<16x1xf32> to vector<16x32xf32>
    %17 = arith.subf %2, %16 : vector<16x32xf32>
    %cst_12 = arith.constant 9.99999996E-13 : f32
    %18 = vector.broadcast %cst_12 : f32 to vector<16x1xf32>
    %19 = arith.addf %15, %18 : vector<16x1xf32>
    %20 = math.rsqrt %19 : vector<16x1xf32>
    %21 = vector.broadcast %20 : vector<16x1xf32> to vector<16x32xf32>
    %22 = arith.mulf %17, %21 : vector<16x32xf32>
    %23 = vector.broadcast %3 : vector<1x32xf32> to vector<16x32xf32>
    %24 = arith.mulf %22, %23 : vector<16x32xf32>
    %25 = vector.broadcast %4 : vector<1x32xf32> to vector<16x32xf32>
    %26 = arith.addf %24, %25 : vector<16x32xf32>
    %27 = arith.truncf %26 : vector<16x32xf32> to vector<16x32xbf16>
    %c0_13 = arith.constant 0 : index
    %c0_14 = arith.constant 0 : index
    %c0_15 = arith.constant 0 : index
    %28 = vector.load %arg5[%c0_13, %c0_14, %c0_15] : memref<1x32x96xbf16, #tpu.memory_space<vmem>>, vector<1x32x96xbf16>
    %29 = vector.shape_cast %28 : vector<1x32x96xbf16> to vector<32x96xbf16>
    %cst_16 = arith.constant dense<0.000000e+00> : vector<16x96xf32>
    %30 = tpu.matmul %27, %29, %cst_16 {dimension_numbers = #tpu.dot_dimension_numbers<[1], [0], [0], [1], [0, 0, 1, 1], [], []>} : vector<16x32xbf16>, vector<32x96xbf16>, vector<16x96xf32> -> vector<16x96xf32>
    %c0_17 = arith.constant 0 : index
    %c0_18 = arith.constant 0 : index
    %c0_19 = arith.constant 0 : index
    %31 = vector.load %arg6[%c0_17, %c0_18, %c0_19] : memref<1x1x96xf32, #tpu.memory_space<vmem>>, vector<1x1x96xf32>
    %32 = vector.shape_cast %31 : vector<1x1x96xf32> to vector<1x96xf32>
    %33 = vector.broadcast %32 : vector<1x96xf32> to vector<16x96xf32>
    %34 = arith.addf %30, %33 : vector<16x96xf32>
    %35 = vector.extract_strided_slice %34 {offsets = [0, 0], sizes = [16, 32], strides = [1, 1]} : vector<16x96xf32> to vector<16x32xf32>
    %36 = vector.extract_strided_slice %34 {offsets = [0, 32], sizes = [16, 32], strides = [1, 1]} : vector<16x96xf32> to vector<16x32xf32>
    %37 = vector.extract_strided_slice %34 {offsets = [0, 64], sizes = [16, 32], strides = [1, 1]} : vector<16x96xf32> to vector<16x32xf32>
    %38 = vector.extract_strided_slice %35 {offsets = [0, 0], sizes = [16, 16], strides = [1, 1]} : vector<16x32xf32> to vector<16x16xf32>
    %39 = arith.truncf %38 : vector<16x16xf32> to vector<16x16xbf16>
    %40 = vector.extract_strided_slice %36 {offsets = [0, 0], sizes = [16, 16], strides = [1, 1]} : vector<16x32xf32> to vector<16x16xf32>
    %41 = arith.truncf %40 : vector<16x16xf32> to vector<16x16xbf16>
    %cst_20 = arith.constant dense<0.000000e+00> : vector<16x16xf32>
    %42 = tpu.matmul %39, %41, %cst_20 {dimension_numbers = #tpu.dot_dimension_numbers<[1], [1], [0], [0], [0, 0, 1, 0], [], []>} : vector<16x16xbf16>, vector<16x16xbf16>, vector<16x16xf32> -> vector<16x16xf32>
    %43 = arith.addf %42, %0 : vector<16x16xf32>
    %cst_21 = arith.constant dense<0xFF800000> : vector<16xf32>
    %44 = vector.multi_reduction <maximumf>, %43, %cst_21 [1] : vector<16x16xf32> to vector<16xf32>
    %45 = vector.shape_cast %44 : vector<16xf32> to vector<16x1xf32>
    %46 = vector.broadcast %45 : vector<16x1xf32> to vector<16x16xf32>
    %47 = arith.subf %43, %46 : vector<16x16xf32>
    %48 = math.exp %47 : vector<16x16xf32>
    %cst_22 = arith.constant dense<0.000000e+00> : vector<16xf32>
    %49 = vector.multi_reduction <add>, %48, %cst_22 [1] : vector<16x16xf32> to vector<16xf32>
    %50 = vector.shape_cast %49 : vector<16xf32> to vector<16x1xf32>
    %51 = tpu.reciprocal %50 {approx = true} : vector<16x1xf32> -> vector<16x1xf32>
    %52 = vector.broadcast %51 : vector<16x1xf32> to vector<16x16xf32>
    %53 = arith.mulf %48, %52 : vector<16x16xf32>
    %54 = arith.truncf %53 : vector<16x16xf32> to vector<16x16xbf16>
    %55 = vector.extract_strided_slice %37 {offsets = [0, 0], sizes = [16, 16], strides = [1, 1]} : vector<16x32xf32> to vector<16x16xf32>
    %56 = arith.truncf %55 : vector<16x16xf32> to vector<16x16xbf16>
    %cst_23 = arith.constant dense<0.000000e+00> : vector<16x16xf32>
    %57 = tpu.matmul %54, %56, %cst_23 {dimension_numbers = #tpu.dot_dimension_numbers<[1], [0], [0], [1], [0, 0, 1, 1], [], []>} : vector<16x16xbf16>, vector<16x16xbf16>, vector<16x16xf32> -> vector<16x16xf32>
    %58 = vector.extract_strided_slice %35 {offsets = [0, 16], sizes = [16, 16], strides = [1, 1]} : vector<16x32xf32> to vector<16x16xf32>
    %59 = arith.truncf %58 : vector<16x16xf32> to vector<16x16xbf16>
    %60 = vector.extract_strided_slice %36 {offsets = [0, 16], sizes = [16, 16], strides = [1, 1]} : vector<16x32xf32> to vector<16x16xf32>
    %61 = arith.truncf %60 : vector<16x16xf32> to vector<16x16xbf16>
    %cst_24 = arith.constant dense<0.000000e+00> : vector<16x16xf32>
    %62 = tpu.matmul %59, %61, %cst_24 {dimension_numbers = #tpu.dot_dimension_numbers<[1], [1], [0], [0], [0, 0, 1, 0], [], []>} : vector<16x16xbf16>, vector<16x16xbf16>, vector<16x16xf32> -> vector<16x16xf32>
    %63 = arith.addf %62, %0 : vector<16x16xf32>
    %cst_25 = arith.constant dense<0xFF800000> : vector<16xf32>
    %64 = vector.multi_reduction <maximumf>, %63, %cst_25 [1] : vector<16x16xf32> to vector<16xf32>
    %65 = vector.shape_cast %64 : vector<16xf32> to vector<16x1xf32>
    %66 = vector.broadcast %65 : vector<16x1xf32> to vector<16x16xf32>
    %67 = arith.subf %63, %66 : vector<16x16xf32>
    %68 = math.exp %67 : vector<16x16xf32>
    %cst_26 = arith.constant dense<0.000000e+00> : vector<16xf32>
    %69 = vector.multi_reduction <add>, %68, %cst_26 [1] : vector<16x16xf32> to vector<16xf32>
    %70 = vector.shape_cast %69 : vector<16xf32> to vector<16x1xf32>
    %71 = tpu.reciprocal %70 {approx = true} : vector<16x1xf32> -> vector<16x1xf32>
    %72 = vector.broadcast %71 : vector<16x1xf32> to vector<16x16xf32>
    %73 = arith.mulf %68, %72 : vector<16x16xf32>
    %74 = arith.truncf %73 : vector<16x16xf32> to vector<16x16xbf16>
    %75 = vector.extract_strided_slice %37 {offsets = [0, 16], sizes = [16, 16], strides = [1, 1]} : vector<16x32xf32> to vector<16x16xf32>
    %76 = arith.truncf %75 : vector<16x16xf32> to vector<16x16xbf16>
    %cst_27 = arith.constant dense<0.000000e+00> : vector<16x16xf32>
    %77 = tpu.matmul %74, %76, %cst_27 {dimension_numbers = #tpu.dot_dimension_numbers<[1], [0], [0], [1], [0, 0, 1, 1], [], []>} : vector<16x16xbf16>, vector<16x16xbf16>, vector<16x16xf32> -> vector<16x16xf32>
    %78 = tpu.concatenate %57, %77 in 1 : vector<16x16xf32>, vector<16x16xf32> -> vector<16x32xf32>
    %79 = arith.truncf %78 : vector<16x32xf32> to vector<16x32xbf16>
    %c0_28 = arith.constant 0 : index
    %c0_29 = arith.constant 0 : index
    %c0_30 = arith.constant 0 : index
    %80 = vector.load %arg11[%c0_28, %c0_29, %c0_30] : memref<2x32x32xbf16, #tpu.memory_space<vmem>>, vector<1x32x32xbf16>
    %81 = vector.shape_cast %80 : vector<1x32x32xbf16> to vector<32x32xbf16>
    %cst_31 = arith.constant dense<0.000000e+00> : vector<16x32xf32>
    %82 = tpu.matmul %79, %81, %cst_31 {dimension_numbers = #tpu.dot_dimension_numbers<[1], [0], [0], [1], [0, 0, 1, 1], [], []>} : vector<16x32xbf16>, vector<32x32xbf16>, vector<16x32xf32> -> vector<16x32xf32>
    %c0_32 = arith.constant 0 : index
    %c0_33 = arith.constant 0 : index
    %c0_34 = arith.constant 0 : index
    %83 = vector.load %arg12[%c0_32, %c0_33, %c0_34] : memref<2x1x32xf32, #tpu.memory_space<vmem>>, vector<1x1x32xf32>
    %84 = vector.shape_cast %83 : vector<1x1x32xf32> to vector<1x32xf32>
    %85 = vector.broadcast %84 : vector<1x32xf32> to vector<16x32xf32>
    %86 = arith.addf %82, %85 : vector<16x32xf32>
    %87 = arith.addf %26, %86 : vector<16x32xf32>
    %c0_35 = arith.constant 0 : index
    %c0_36 = arith.constant 0 : index
    %c0_37 = arith.constant 0 : index
    %88 = vector.load %arg13[%c0_35, %c0_36, %c0_37] : memref<2x1x32xf32, #tpu.memory_space<vmem>>, vector<1x1x32xf32>
    %89 = vector.shape_cast %88 : vector<1x1x32xf32> to vector<1x32xf32>
    %c0_38 = arith.constant 0 : index
    %c0_39 = arith.constant 0 : index
    %c0_40 = arith.constant 0 : index
    %90 = vector.load %arg14[%c0_38, %c0_39, %c0_40] : memref<2x1x32xf32, #tpu.memory_space<vmem>>, vector<1x1x32xf32>
    %91 = vector.shape_cast %90 : vector<1x1x32xf32> to vector<1x32xf32>
    %cst_41 = arith.constant dense<0.000000e+00> : vector<16xf32>
    %92 = vector.multi_reduction <add>, %87, %cst_41 [1] : vector<16x32xf32> to vector<16xf32>
    %93 = vector.shape_cast %92 : vector<16xf32> to vector<16x1xf32>
    %cst_42 = arith.constant 3.200000e+01 : f32
    %94 = vector.broadcast %cst_42 : f32 to vector<16x1xf32>
    %95 = arith.divf %93, %94 : vector<16x1xf32>
    %96 = vector.broadcast %95 : vector<16x1xf32> to vector<16x32xf32>
    %97 = arith.subf %87, %96 : vector<16x32xf32>
    %98 = arith.mulf %97, %97 : vector<16x32xf32>
    %cst_43 = arith.constant dense<0.000000e+00> : vector<16xf32>
    %99 = vector.multi_reduction <add>, %98, %cst_43 [1] : vector<16x32xf32> to vector<16xf32>
    %100 = vector.shape_cast %99 : vector<16xf32> to vector<16x1xf32>
    %cst_44 = arith.constant 3.200000e+01 : f32
    %101 = vector.broadcast %cst_44 : f32 to vector<16x1xf32>
    %102 = arith.divf %100, %101 : vector<16x1xf32>
    %103 = vector.broadcast %95 : vector<16x1xf32> to vector<16x32xf32>
    %104 = arith.subf %87, %103 : vector<16x32xf32>
    %cst_45 = arith.constant 9.99999996E-13 : f32
    %105 = vector.broadcast %cst_45 : f32 to vector<16x1xf32>
    %106 = arith.addf %102, %105 : vector<16x1xf32>
    %107 = math.rsqrt %106 : vector<16x1xf32>
    %108 = vector.broadcast %107 : vector<16x1xf32> to vector<16x32xf32>
    %109 = arith.mulf %104, %108 : vector<16x32xf32>
    %110 = vector.broadcast %89 : vector<1x32xf32> to vector<16x32xf32>
    %111 = arith.mulf %109, %110 : vector<16x32xf32>
    %112 = vector.broadcast %91 : vector<1x32xf32> to vector<16x32xf32>
    %113 = arith.addf %111, %112 : vector<16x32xf32>
    %114 = arith.truncf %113 : vector<16x32xf32> to vector<16x32xbf16>
    %c0_46 = arith.constant 0 : index
    %c0_47 = arith.constant 0 : index
    %c0_48 = arith.constant 0 : index
    %115 = vector.load %arg15[%c0_46, %c0_47, %c0_48] : memref<2x32x64xbf16, #tpu.memory_space<vmem>>, vector<1x32x64xbf16>
    %116 = vector.shape_cast %115 : vector<1x32x64xbf16> to vector<32x64xbf16>
    %cst_49 = arith.constant dense<0.000000e+00> : vector<16x64xf32>
    %117 = tpu.matmul %114, %116, %cst_49 {dimension_numbers = #tpu.dot_dimension_numbers<[1], [0], [0], [1], [0, 0, 1, 1], [], []>} : vector<16x32xbf16>, vector<32x64xbf16>, vector<16x64xf32> -> vector<16x64xf32>
    %c0_50 = arith.constant 0 : index
    %c0_51 = arith.constant 0 : index
    %c0_52 = arith.constant 0 : index
    %118 = vector.load %arg16[%c0_50, %c0_51, %c0_52] : memref<2x1x64xf32, #tpu.memory_space<vmem>>, vector<1x1x64xf32>
    %119 = vector.shape_cast %118 : vector<1x1x64xf32> to vector<1x64xf32>
    %120 = vector.broadcast %119 : vector<1x64xf32> to vector<16x64xf32>
    %121 = arith.addf %117, %120 : vector<16x64xf32>
    %cst_53 = arith.constant 5.000000e-01 : f32
    %122 = vector.broadcast %cst_53 : f32 to vector<16x64xf32>
    %123 = arith.mulf %122, %121 : vector<16x64xf32>
    %cst_54 = arith.constant 4.471500e-02 : f32
    %124 = vector.broadcast %cst_54 : f32 to vector<16x64xf32>
    %125 = arith.mulf %124, %121 : vector<16x64xf32>
    %126 = arith.mulf %125, %121 : vector<16x64xf32>
    %127 = arith.mulf %126, %121 : vector<16x64xf32>
    %128 = arith.addf %121, %127 : vector<16x64xf32>
    %cst_55 = arith.constant 0.797884583 : f32
    %129 = vector.broadcast %cst_55 : f32 to vector<16x64xf32>
    %130 = arith.mulf %129, %128 : vector<16x64xf32>
    %131 = math.tanh %130 : vector<16x64xf32>
    %cst_56 = arith.constant 1.000000e+00 : f32
    %132 = vector.broadcast %cst_56 : f32 to vector<16x64xf32>
    %133 = arith.addf %132, %131 : vector<16x64xf32>
    %134 = arith.mulf %123, %133 : vector<16x64xf32>
    %135 = arith.truncf %134 : vector<16x64xf32> to vector<16x64xbf16>
    %c0_57 = arith.constant 0 : index
    %c0_58 = arith.constant 0 : index
    %c0_59 = arith.constant 0 : index
    %136 = vector.load %arg17[%c0_57, %c0_58, %c0_59] : memref<2x64x32xbf16, #tpu.memory_space<vmem>>, vector<1x64x32xbf16>
    %137 = vector.shape_cast %136 : vector<1x64x32xbf16> to vector<64x32xbf16>
    %cst_60 = arith.constant dense<0.000000e+00> : vector<16x32xf32>
    %138 = tpu.matmul %135, %137, %cst_60 {dimension_numbers = #tpu.dot_dimension_numbers<[1], [0], [0], [1], [0, 0, 1, 1], [], []>} : vector<16x64xbf16>, vector<64x32xbf16>, vector<16x32xf32> -> vector<16x32xf32>
    %c0_61 = arith.constant 0 : index
    %c0_62 = arith.constant 0 : index
    %c0_63 = arith.constant 0 : index
    %139 = vector.load %arg18[%c0_61, %c0_62, %c0_63] : memref<2x1x32xf32, #tpu.memory_space<vmem>>, vector<1x1x32xf32>
    %140 = vector.shape_cast %139 : vector<1x1x32xf32> to vector<1x32xf32>
    %141 = vector.broadcast %140 : vector<1x32xf32> to vector<16x32xf32>
    %142 = arith.addf %138, %141 : vector<16x32xf32>
    %143 = arith.addf %113, %142 : vector<16x32xf32>
    %c0_64 = arith.constant 0 : index
    %c0_65 = arith.constant 0 : index
    %c0_66 = arith.constant 0 : index
    %144 = vector.load %arg19[%c0_64, %c0_65, %c0_66] : memref<2x1x32xf32, #tpu.memory_space<vmem>>, vector<1x1x32xf32>
    %145 = vector.shape_cast %144 : vector<1x1x32xf32> to vector<1x32xf32>
    %c0_67 = arith.constant 0 : index
    %c0_68 = arith.constant 0 : index
    %c0_69 = arith.constant 0 : index
    %146 = vector.load %arg20[%c0_67, %c0_68, %c0_69] : memref<2x1x32xf32, #tpu.memory_space<vmem>>, vector<1x1x32xf32>
    %147 = vector.shape_cast %146 : vector<1x1x32xf32> to vector<1x32xf32>
    %cst_70 = arith.constant dense<0.000000e+00> : vector<16xf32>
    %148 = vector.multi_reduction <add>, %143, %cst_70 [1] : vector<16x32xf32> to vector<16xf32>
    %149 = vector.shape_cast %148 : vector<16xf32> to vector<16x1xf32>
    %cst_71 = arith.constant 3.200000e+01 : f32
    %150 = vector.broadcast %cst_71 : f32 to vector<16x1xf32>
    %151 = arith.divf %149, %150 : vector<16x1xf32>
    %152 = vector.broadcast %151 : vector<16x1xf32> to vector<16x32xf32>
    %153 = arith.subf %143, %152 : vector<16x32xf32>
    %154 = arith.mulf %153, %153 : vector<16x32xf32>
    %cst_72 = arith.constant dense<0.000000e+00> : vector<16xf32>
    %155 = vector.multi_reduction <add>, %154, %cst_72 [1] : vector<16x32xf32> to vector<16xf32>
    %156 = vector.shape_cast %155 : vector<16xf32> to vector<16x1xf32>
    %cst_73 = arith.constant 3.200000e+01 : f32
    %157 = vector.broadcast %cst_73 : f32 to vector<16x1xf32>
    %158 = arith.divf %156, %157 : vector<16x1xf32>
    %159 = vector.broadcast %151 : vector<16x1xf32> to vector<16x32xf32>
    %160 = arith.subf %143, %159 : vector<16x32xf32>
    %cst_74 = arith.constant 9.99999996E-13 : f32
    %161 = vector.broadcast %cst_74 : f32 to vector<16x1xf32>
    %162 = arith.addf %158, %161 : vector<16x1xf32>
    %163 = math.rsqrt %162 : vector<16x1xf32>
    %164 = vector.broadcast %163 : vector<16x1xf32> to vector<16x32xf32>
    %165 = arith.mulf %160, %164 : vector<16x32xf32>
    %166 = vector.broadcast %145 : vector<1x32xf32> to vector<16x32xf32>
    %167 = arith.mulf %165, %166 : vector<16x32xf32>
    %168 = vector.broadcast %147 : vector<1x32xf32> to vector<16x32xf32>
    %169 = arith.addf %167, %168 : vector<16x32xf32>
    %c0_75 = arith.constant 0 : index
    %c0_76 = arith.constant 0 : index
    %170 = vector.load %arg24[%c0_75, %c0_76] : memref<16x32xf32, #tpu.memory_space<vmem>>, vector<16x32xf32>
    tpu.vector_store %arg24[%c0_75, %c0_76], %169 {strides = array<i32>} : memref<16x32xf32, #tpu.memory_space<vmem>>, vector<16x32xf32>,
    %c0_77 = arith.constant 0 : index
    %c0_78 = arith.constant 0 : index
    %171 = tpu.strided_load %arg24[%c0_77, %c0_78] {strides = array<i32: 8, 1>} : memref<16x32xf32, #tpu.memory_space<vmem>>, vector<2x32xf32>
    %172 = arith.truncf %169 : vector<16x32xf32> to vector<16x32xbf16>
    %c0_79 = arith.constant 0 : index
    %c0_80 = arith.constant 0 : index
    %173 = vector.load %arg9[%c0_79, %c0_80] : memref<32x64xbf16, #tpu.memory_space<vmem>>, vector<32x64xbf16>
    %cst_81 = arith.constant dense<0.000000e+00> : vector<16x64xf32>
    %174 = tpu.matmul %172, %173, %cst_81 {dimension_numbers = #tpu.dot_dimension_numbers<[1], [0], [0], [1], [0, 0, 1, 1], [], []>} : vector<16x32xbf16>, vector<32x64xbf16>, vector<16x64xf32> -> vector<16x64xf32>
    %c0_82 = arith.constant 0 : index
    %c0_83 = arith.constant 0 : index
    %175 = vector.load %arg10[%c0_82, %c0_83] : memref<1x64xf32, #tpu.memory_space<vmem>>, vector<1x64xf32>
    %176 = vector.broadcast %175 : vector<1x64xf32> to vector<16x64xf32>
    %177 = arith.addf %174, %176 : vector<16x64xf32>
    %178 = arith.truncf %171 : vector<2x32xf32> to vector<2x32xbf16>
    %c0_84 = arith.constant 0 : index
    %c0_85 = arith.constant 0 : index
    %179 = vector.load %arg7[%c0_84, %c0_85] : memref<32x32xbf16, #tpu.memory_space<vmem>>, vector<32x32xbf16>
    %cst_86 = arith.constant dense<0.000000e+00> : vector<2x32xf32>
    %180 = tpu.matmul %178, %179, %cst_86 {dimension_numbers = #tpu.dot_dimension_numbers<[1], [0], [0], [1], [0, 0, 1, 1], [], []>} : vector<2x32xbf16>, vector<32x32xbf16>, vector<2x32xf32> -> vector<2x32xf32>
    %c0_87 = arith.constant 0 : index
    %c0_88 = arith.constant 0 : index
    %181 = vector.load %arg8[%c0_87, %c0_88] : memref<1x32xf32, #tpu.memory_space<vmem>>, vector<1x32xf32>
    %182 = vector.broadcast %181 : vector<1x32xf32> to vector<2x32xf32>
    %183 = arith.addf %180, %182 : vector<2x32xf32>
    %184 = vector.extract_strided_slice %177 {offsets = [0, 0], sizes = [16, 32], strides = [1, 1]} : vector<16x64xf32> to vector<16x32xf32>
    %185 = vector.extract_strided_slice %177 {offsets = [0, 32], sizes = [16, 32], strides = [1, 1]} : vector<16x64xf32> to vector<16x32xf32>
    %186 = vector.extract_strided_slice %183 {offsets = [0, 0], sizes = [2, 16], strides = [1, 1]} : vector<2x32xf32> to vector<2x16xf32>
    %187 = arith.truncf %186 : vector<2x16xf32> to vector<2x16xbf16>
    %188 = vector.extract_strided_slice %184 {offsets = [0, 0], sizes = [16, 16], strides = [1, 1]} : vector<16x32xf32> to vector<16x16xf32>
    %189 = arith.truncf %188 : vector<16x16xf32> to vector<16x16xbf16>
    %cst_89 = arith.constant dense<0.000000e+00> : vector<2x16xf32>
    %190 = tpu.matmul %187, %189, %cst_89 {dimension_numbers = #tpu.dot_dimension_numbers<[1], [1], [0], [0], [0, 0, 1, 0], [], []>} : vector<2x16xbf16>, vector<16x16xbf16>, vector<2x16xf32> -> vector<2x16xf32>
    %191 = arith.addf %190, %1 : vector<2x16xf32>
    %cst_90 = arith.constant dense<0xFF800000> : vector<2xf32>
    %192 = vector.multi_reduction <maximumf>, %191, %cst_90 [1] : vector<2x16xf32> to vector<2xf32>
    %193 = vector.shape_cast %192 : vector<2xf32> to vector<2x1xf32>
    %194 = vector.broadcast %193 : vector<2x1xf32> to vector<2x16xf32>
    %195 = arith.subf %191, %194 : vector<2x16xf32>
    %196 = math.exp %195 : vector<2x16xf32>
    %cst_91 = arith.constant dense<0.000000e+00> : vector<2xf32>
    %197 = vector.multi_reduction <add>, %196, %cst_91 [1] : vector<2x16xf32> to vector<2xf32>
    %198 = vector.shape_cast %197 : vector<2xf32> to vector<2x1xf32>
    %199 = tpu.reciprocal %198 {approx = true} : vector<2x1xf32> -> vector<2x1xf32>
    %200 = vector.broadcast %199 : vector<2x1xf32> to vector<2x16xf32>
    %201 = arith.mulf %196, %200 : vector<2x16xf32>
    %202 = arith.truncf %201 : vector<2x16xf32> to vector<2x16xbf16>
    %203 = vector.extract_strided_slice %185 {offsets = [0, 0], sizes = [16, 16], strides = [1, 1]} : vector<16x32xf32> to vector<16x16xf32>
    %204 = arith.truncf %203 : vector<16x16xf32> to vector<16x16xbf16>
    %cst_92 = arith.constant dense<0.000000e+00> : vector<2x16xf32>
    %205 = tpu.matmul %202, %204, %cst_92 {dimension_numbers = #tpu.dot_dimension_numbers<[1], [0], [0], [1], [0, 0, 1, 1], [], []>} : vector<2x16xbf16>, vector<16x16xbf16>, vector<2x16xf32> -> vector<2x16xf32>
    %206 = vector.extract_strided_slice %183 {offsets = [0, 16], sizes = [2, 16], strides = [1, 1]} : vector<2x32xf32> to vector<2x16xf32>
    %207 = arith.truncf %206 : vector<2x16xf32> to vector<2x16xbf16>
    %208 = vector.extract_strided_slice %184 {offsets = [0, 16], sizes = [16, 16], strides = [1, 1]} : vector<16x32xf32> to vector<16x16xf32>
    %209 = arith.truncf %208 : vector<16x16xf32> to vector<16x16xbf16>
    %cst_93 = arith.constant dense<0.000000e+00> : vector<2x16xf32>
    %210 = tpu.matmul %207, %209, %cst_93 {dimension_numbers = #tpu.dot_dimension_numbers<[1], [1], [0], [0], [0, 0, 1, 0], [], []>} : vector<2x16xbf16>, vector<16x16xbf16>, vector<2x16xf32> -> vector<2x16xf32>
    %211 = arith.addf %210, %1 : vector<2x16xf32>
    %cst_94 = arith.constant dense<0xFF800000> : vector<2xf32>
    %212 = vector.multi_reduction <maximumf>, %211, %cst_94 [1] : vector<2x16xf32> to vector<2xf32>
    %213 = vector.shape_cast %212 : vector<2xf32> to vector<2x1xf32>
    %214 = vector.broadcast %213 : vector<2x1xf32> to vector<2x16xf32>
    %215 = arith.subf %211, %214 : vector<2x16xf32>
    %216 = math.exp %215 : vector<2x16xf32>
    %cst_95 = arith.constant dense<0.000000e+00> : vector<2xf32>
    %217 = vector.multi_reduction <add>, %216, %cst_95 [1] : vector<2x16xf32> to vector<2xf32>
    %218 = vector.shape_cast %217 : vector<2xf32> to vector<2x1xf32>
    %219 = tpu.reciprocal %218 {approx = true} : vector<2x1xf32> -> vector<2x1xf32>
    %220 = vector.broadcast %219 : vector<2x1xf32> to vector<2x16xf32>
    %221 = arith.mulf %216, %220 : vector<2x16xf32>
    %222 = arith.truncf %221 : vector<2x16xf32> to vector<2x16xbf16>
    %223 = vector.extract_strided_slice %185 {offsets = [0, 16], sizes = [16, 16], strides = [1, 1]} : vector<16x32xf32> to vector<16x16xf32>
    %224 = arith.truncf %223 : vector<16x16xf32> to vector<16x16xbf16>
    %cst_96 = arith.constant dense<0.000000e+00> : vector<2x16xf32>
    %225 = tpu.matmul %222, %224, %cst_96 {dimension_numbers = #tpu.dot_dimension_numbers<[1], [0], [0], [1], [0, 0, 1, 1], [], []>} : vector<2x16xbf16>, vector<16x16xbf16>, vector<2x16xf32> -> vector<2x16xf32>
    %226 = tpu.concatenate %205, %225 in 1 : vector<2x16xf32>, vector<2x16xf32> -> vector<2x32xf32>
    %227 = arith.truncf %226 : vector<2x32xf32> to vector<2x32xbf16>
    %c1 = arith.constant 1 : index
    %c0_97 = arith.constant 0 : index
    %c0_98 = arith.constant 0 : index
    %228 = vector.load %arg11[%c1, %c0_97, %c0_98] : memref<2x32x32xbf16, #tpu.memory_space<vmem>>, vector<1x32x32xbf16>
    %229 = vector.shape_cast %228 : vector<1x32x32xbf16> to vector<32x32xbf16>
    %cst_99 = arith.constant dense<0.000000e+00> : vector<2x32xf32>
    %230 = tpu.matmul %227, %229, %cst_99 {dimension_numbers = #tpu.dot_dimension_numbers<[1], [0], [0], [1], [0, 0, 1, 1], [], []>} : vector<2x32xbf16>, vector<32x32xbf16>, vector<2x32xf32> -> vector<2x32xf32>
    %c1_100 = arith.constant 1 : index
    %c0_101 = arith.constant 0 : index
    %c0_102 = arith.constant 0 : index
    %231 = vector.load %arg12[%c1_100, %c0_101, %c0_102] : memref<2x1x32xf32, #tpu.memory_space<vmem>>, vector<1x1x32xf32>
    %232 = vector.shape_cast %231 : vector<1x1x32xf32> to vector<1x32xf32>
    %233 = vector.broadcast %232 : vector<1x32xf32> to vector<2x32xf32>
    %234 = arith.addf %230, %233 : vector<2x32xf32>
    %235 = arith.addf %171, %234 : vector<2x32xf32>
    %c1_103 = arith.constant 1 : index
    %c0_104 = arith.constant 0 : index
    %c0_105 = arith.constant 0 : index
    %236 = vector.load %arg13[%c1_103, %c0_104, %c0_105] : memref<2x1x32xf32, #tpu.memory_space<vmem>>, vector<1x1x32xf32>
    %237 = vector.shape_cast %236 : vector<1x1x32xf32> to vector<1x32xf32>
    %c1_106 = arith.constant 1 : index
    %c0_107 = arith.constant 0 : index
    %c0_108 = arith.constant 0 : index
    %238 = vector.load %arg14[%c1_106, %c0_107, %c0_108] : memref<2x1x32xf32, #tpu.memory_space<vmem>>, vector<1x1x32xf32>
    %239 = vector.shape_cast %238 : vector<1x1x32xf32> to vector<1x32xf32>
    %cst_109 = arith.constant dense<0.000000e+00> : vector<2xf32>
    %240 = vector.multi_reduction <add>, %235, %cst_109 [1] : vector<2x32xf32> to vector<2xf32>
    %241 = vector.shape_cast %240 : vector<2xf32> to vector<2x1xf32>
    %cst_110 = arith.constant 3.200000e+01 : f32
    %242 = vector.broadcast %cst_110 : f32 to vector<2x1xf32>
    %243 = arith.divf %241, %242 : vector<2x1xf32>
    %244 = vector.broadcast %243 : vector<2x1xf32> to vector<2x32xf32>
    %245 = arith.subf %235, %244 : vector<2x32xf32>
    %246 = arith.mulf %245, %245 : vector<2x32xf32>
    %cst_111 = arith.constant dense<0.000000e+00> : vector<2xf32>
    %247 = vector.multi_reduction <add>, %246, %cst_111 [1] : vector<2x32xf32> to vector<2xf32>
    %248 = vector.shape_cast %247 : vector<2xf32> to vector<2x1xf32>
    %cst_112 = arith.constant 3.200000e+01 : f32
    %249 = vector.broadcast %cst_112 : f32 to vector<2x1xf32>
    %250 = arith.divf %248, %249 : vector<2x1xf32>
    %251 = vector.broadcast %243 : vector<2x1xf32> to vector<2x32xf32>
    %252 = arith.subf %235, %251 : vector<2x32xf32>
    %cst_113 = arith.constant 9.99999996E-13 : f32
    %253 = vector.broadcast %cst_113 : f32 to vector<2x1xf32>
    %254 = arith.addf %250, %253 : vector<2x1xf32>
    %255 = math.rsqrt %254 : vector<2x1xf32>
    %256 = vector.broadcast %255 : vector<2x1xf32> to vector<2x32xf32>
    %257 = arith.mulf %252, %256 : vector<2x32xf32>
    %258 = vector.broadcast %237 : vector<1x32xf32> to vector<2x32xf32>
    %259 = arith.mulf %257, %258 : vector<2x32xf32>
    %260 = vector.broadcast %239 : vector<1x32xf32> to vector<2x32xf32>
    %261 = arith.addf %259, %260 : vector<2x32xf32>
    %262 = arith.truncf %261 : vector<2x32xf32> to vector<2x32xbf16>
    %c1_114 = arith.constant 1 : index
    %c0_115 = arith.constant 0 : index
    %c0_116 = arith.constant 0 : index
    %263 = vector.load %arg15[%c1_114, %c0_115, %c0_116] : memref<2x32x64xbf16, #tpu.memory_space<vmem>>, vector<1x32x64xbf16>
    %264 = vector.shape_cast %263 : vector<1x32x64xbf16> to vector<32x64xbf16>
    %cst_117 = arith.constant dense<0.000000e+00> : vector<2x64xf32>
    %265 = tpu.matmul %262, %264, %cst_117 {dimension_numbers = #tpu.dot_dimension_numbers<[1], [0], [0], [1], [0, 0, 1, 1], [], []>} : vector<2x32xbf16>, vector<32x64xbf16>, vector<2x64xf32> -> vector<2x64xf32>
    %c1_118 = arith.constant 1 : index
    %c0_119 = arith.constant 0 : index
    %c0_120 = arith.constant 0 : index
    %266 = vector.load %arg16[%c1_118, %c0_119, %c0_120] : memref<2x1x64xf32, #tpu.memory_space<vmem>>, vector<1x1x64xf32>
    %267 = vector.shape_cast %266 : vector<1x1x64xf32> to vector<1x64xf32>
    %268 = vector.broadcast %267 : vector<1x64xf32> to vector<2x64xf32>
    %269 = arith.addf %265, %268 : vector<2x64xf32>
    %cst_121 = arith.constant 5.000000e-01 : f32
    %270 = vector.broadcast %cst_121 : f32 to vector<2x64xf32>
    %271 = arith.mulf %270, %269 : vector<2x64xf32>
    %cst_122 = arith.constant 4.471500e-02 : f32
    %272 = vector.broadcast %cst_122 : f32 to vector<2x64xf32>
    %273 = arith.mulf %272, %269 : vector<2x64xf32>
    %274 = arith.mulf %273, %269 : vector<2x64xf32>
    %275 = arith.mulf %274, %269 : vector<2x64xf32>
    %276 = arith.addf %269, %275 : vector<2x64xf32>
    %cst_123 = arith.constant 0.797884583 : f32
    %277 = vector.broadcast %cst_123 : f32 to vector<2x64xf32>
    %278 = arith.mulf %277, %276 : vector<2x64xf32>
    %279 = math.tanh %278 : vector<2x64xf32>
    %cst_124 = arith.constant 1.000000e+00 : f32
    %280 = vector.broadcast %cst_124 : f32 to vector<2x64xf32>
    %281 = arith.addf %280, %279 : vector<2x64xf32>
    %282 = arith.mulf %271, %281 : vector<2x64xf32>
    %283 = arith.truncf %282 : vector<2x64xf32> to vector<2x64xbf16>
    %c1_125 = arith.constant 1 : index
    %c0_126 = arith.constant 0 : index
    %c0_127 = arith.constant 0 : index
    %284 = vector.load %arg17[%c1_125, %c0_126, %c0_127] : memref<2x64x32xbf16, #tpu.memory_space<vmem>>, vector<1x64x32xbf16>
    %285 = vector.shape_cast %284 : vector<1x64x32xbf16> to vector<64x32xbf16>
    %cst_128 = arith.constant dense<0.000000e+00> : vector<2x32xf32>
    %286 = tpu.matmul %283, %285, %cst_128 {dimension_numbers = #tpu.dot_dimension_numbers<[1], [0], [0], [1], [0, 0, 1, 1], [], []>} : vector<2x64xbf16>, vector<64x32xbf16>, vector<2x32xf32> -> vector<2x32xf32>
    %c1_129 = arith.constant 1 : index
    %c0_130 = arith.constant 0 : index
    %c0_131 = arith.constant 0 : index
    %287 = vector.load %arg18[%c1_129, %c0_130, %c0_131] : memref<2x1x32xf32, #tpu.memory_space<vmem>>, vector<1x1x32xf32>
    %288 = vector.shape_cast %287 : vector<1x1x32xf32> to vector<1x32xf32>
    %289 = vector.broadcast %288 : vector<1x32xf32> to vector<2x32xf32>
    %290 = arith.addf %286, %289 : vector<2x32xf32>
    %291 = arith.addf %261, %290 : vector<2x32xf32>
    %c1_132 = arith.constant 1 : index
    %c0_133 = arith.constant 0 : index
    %c0_134 = arith.constant 0 : index
    %292 = vector.load %arg19[%c1_132, %c0_133, %c0_134] : memref<2x1x32xf32, #tpu.memory_space<vmem>>, vector<1x1x32xf32>
    %293 = vector.shape_cast %292 : vector<1x1x32xf32> to vector<1x32xf32>
    %c1_135 = arith.constant 1 : index
    %c0_136 = arith.constant 0 : index
    %c0_137 = arith.constant 0 : index
    %294 = vector.load %arg20[%c1_135, %c0_136, %c0_137] : memref<2x1x32xf32, #tpu.memory_space<vmem>>, vector<1x1x32xf32>
    %295 = vector.shape_cast %294 : vector<1x1x32xf32> to vector<1x32xf32>
    %cst_138 = arith.constant dense<0.000000e+00> : vector<2xf32>
    %296 = vector.multi_reduction <add>, %291, %cst_138 [1] : vector<2x32xf32> to vector<2xf32>
    %297 = vector.shape_cast %296 : vector<2xf32> to vector<2x1xf32>
    %cst_139 = arith.constant 3.200000e+01 : f32
    %298 = vector.broadcast %cst_139 : f32 to vector<2x1xf32>
    %299 = arith.divf %297, %298 : vector<2x1xf32>
    %300 = vector.broadcast %299 : vector<2x1xf32> to vector<2x32xf32>
    %301 = arith.subf %291, %300 : vector<2x32xf32>
    %302 = arith.mulf %301, %301 : vector<2x32xf32>
    %cst_140 = arith.constant dense<0.000000e+00> : vector<2xf32>
    %303 = vector.multi_reduction <add>, %302, %cst_140 [1] : vector<2x32xf32> to vector<2xf32>
    %304 = vector.shape_cast %303 : vector<2xf32> to vector<2x1xf32>
    %cst_141 = arith.constant 3.200000e+01 : f32
    %305 = vector.broadcast %cst_141 : f32 to vector<2x1xf32>
    %306 = arith.divf %304, %305 : vector<2x1xf32>
    %307 = vector.broadcast %299 : vector<2x1xf32> to vector<2x32xf32>
    %308 = arith.subf %291, %307 : vector<2x32xf32>
    %cst_142 = arith.constant 9.99999996E-13 : f32
    %309 = vector.broadcast %cst_142 : f32 to vector<2x1xf32>
    %310 = arith.addf %306, %309 : vector<2x1xf32>
    %311 = math.rsqrt %310 : vector<2x1xf32>
    %312 = vector.broadcast %311 : vector<2x1xf32> to vector<2x32xf32>
    %313 = arith.mulf %308, %312 : vector<2x32xf32>
    %314 = vector.broadcast %293 : vector<1x32xf32> to vector<2x32xf32>
    %315 = arith.mulf %313, %314 : vector<2x32xf32>
    %316 = vector.broadcast %295 : vector<1x32xf32> to vector<2x32xf32>
    %317 = arith.addf %315, %316 : vector<2x32xf32>
    %c0_143 = arith.constant 0 : index
    %c0_144 = arith.constant 0 : index
    %318 = vector.load %arg21[%c0_143, %c0_144] : memref<1x32xf32, #tpu.memory_space<vmem>>, vector<1x32xf32>
    %319 = vector.broadcast %318 : vector<1x32xf32> to vector<2x32xf32>
    %320 = arith.mulf %317, %319 : vector<2x32xf32>
    %cst_145 = arith.constant dense<0.000000e+00> : vector<2xf32>
    %321 = vector.multi_reduction <add>, %320, %cst_145 [1] : vector<2x32xf32> to vector<2xf32>
    %322 = vector.shape_cast %321 : vector<2xf32> to vector<2x1xf32>
    %c0_146 = arith.constant 0 : index
    %c0_147 = arith.constant 0 : index
    %323 = vector.load %arg22[%c0_146, %c0_147] : memref<1x1xf32, #tpu.memory_space<vmem>>, vector<1x1xf32>
    %324 = vector.broadcast %323 : vector<1x1xf32> to vector<2x1xf32>
    %325 = arith.addf %322, %324 : vector<2x1xf32>
    %c0_148 = arith.constant 0 : index
    %c0_149 = arith.constant 0 : index
    %326 = vector.load %arg23[%c0_148, %c0_149] : memref<2x1xf32, #tpu.memory_space<vmem>>, vector<2x1xf32>
    tpu.vector_store %arg23[%c0_148, %c0_149], %325 {strides = array<i32>} : memref<2x1xf32, #tpu.memory_space<vmem>>, vector<2x1xf32>,
    return
  }
}

</mosaic_0001>

<llo_original>
// kernel: finbert_regressor_forward.1
$region0: #{finbert_regressor_forward.1}
  #allocation0 [shape = 'u32[]', space=smem, size = 0x4, offset = 0x4, fixed_abs, tag = 'smem constant byte address 0x4 - core index']
  #allocation1 [shape = 'u32[72,128]{1,0:T(1,128)}', space=vmem, size = 0x9000, scoped, tag = 'internal scratch']
  #allocation2 [shape = 'f32[16,32]{1,0:T(8,128)}', space=vmem, size = 0x2000, scoped, tag = 'scratch operand']
  #allocation3 [shape = 'f32[1,1]{1,0:T(1,128)S(1)}', space=vmem, size = 0x200, scoped, tag = 'scoped memory for finbert_regressor_forward.1']
  %s0 = inlined_call_operand.vmem [shape: f32[16,32], index: 0, kind: input, shape index: {}]
  %s1 = inlined_call_operand.vmem [shape: f32[16,16], index: 1, kind: input, shape index: {}]
  %s2 = inlined_call_operand.vmem [shape: f32[2,16], index: 2, kind: input, shape index: {}]
  %s3 = inlined_call_operand.vmem [shape: f32[1,32], index: 3, kind: input, shape index: {}]
  %s4 = inlined_call_operand.vmem [shape: f32[1,32], index: 4, kind: input, shape index: {}]
  %s5 = inlined_call_operand.vmem [shape: bf16[1,32,96], index: 5, kind: input, shape index: {}]
  %s6 = inlined_call_operand.vmem [shape: f32[1,1,96], index: 6, kind: input, shape index: {}]
  %s7 = inlined_call_operand.vmem [shape: bf16[32,32], index: 7, kind: input, shape index: {}]
  %s8 = inlined_call_operand.vmem [shape: f32[1,32], index: 8, kind: input, shape index: {}]
  %s9 = inlined_call_operand.vmem [shape: bf16[32,64], index: 9, kind: input, shape index: {}]
  %s10 = inlined_call_operand.vmem [shape: f32[1,64], index: 10, kind: input, shape index: {}]
  %s11 = inlined_call_operand.vmem [shape: bf16[2,32,32], index: 11, kind: input, shape index: {}]
  %s12 = inlined_call_operand.vmem [shape: f32[2,1,32], index: 12, kind: input, shape index: {}]
  %s13 = inlined_call_operand.vmem [shape: f32[2,1,32], index: 13, kind: input, shape index: {}]
  %s14 = inlined_call_operand.vmem [shape: f32[2,1,32], index: 14, kind: input, shape index: {}]
  %s15 = inlined_call_operand.vmem [shape: bf16[2,32,64], index: 15, kind: input, shape index: {}]
  %s16 = inlined_call_operand.vmem [shape: f32[2,1,64], index: 16, kind: input, shape index: {}]
  %s17 = inlined_call_operand.vmem [shape: bf16[2,64,32], index: 17, kind: input, shape index: {}]
  %s18 = inlined_call_operand.vmem [shape: f32[2,1,32], index: 18, kind: input, shape index: {}]
  %s19 = inlined_call_operand.vmem [shape: f32[2,1,32], index: 19, kind: input, shape index: {}]
  %s20 = inlined_call_operand.vmem [shape: f32[2,1,32], index: 20, kind: input, shape index: {}]
  %s21 = inlined_call_operand.vmem [shape: f32[1,32], index: 21, kind: input, shape index: {}]
  %s22 = inlined_call_operand.<no memory space> [shape: f32[1,1], index: 22, kind: input, shape index: {}]
  %s23 = inlined_call_operand.vmem [shape: f32[2,1], index: 23, kind: output, shape index: {}]
  %s24 = sld [smem:[#allocation0]]
  $region102: #{finbert_regressor_forward.1} parent=0
    _
  %s26 = ssub.s32 1, %s24
  %s27 = scalar_select 0, %s26, %s24
  %v28 = vstv %s22
  %29 = vst [vmem:[#allocation3] sm:$0x1] %v28
  // Predicated region
  $region2: #{finbert_regressor_forward.1} parent=0 // pred_check
    _
  $region3: #{finbert_regressor_forward.1} parent=0 // pred_check_branch
    %31 = sbr.rel (0) target = $region5
  $region4: #{finbert_regressor_forward.1} parent=0 // pred_region
    _
  $region5: #{finbert_regressor_forward.1} parent=0 // pred_fallthru
    _
  // Predicated region
  $region6: #{finbert_regressor_forward.1} parent=0 // pred_check
    _
  $region7: #{finbert_regressor_forward.1} parent=0 // pred_check_branch
    %33 = sbr.rel (0) target = $region9
  $region8: #{finbert_regressor_forward.1} parent=0 // pred_region
    _
  $region9: #{finbert_regressor_forward.1} parent=0 // pred_fallthru
    _
  // Predicated region
  $region10: #{finbert_regressor_forward.1} parent=0 // pred_check
    _
  $region11: #{finbert_regressor_forward.1} parent=0 // pred_check_branch
    %35 = sbr.rel (0) target = $region13
  $region12: #{finbert_regressor_forward.1} parent=0 // pred_region
    _
  $region13: #{finbert_regressor_forward.1} parent=0 // pred_fallthru
    _
  // Predicated region
  $region14: #{finbert_regressor_forward.1} parent=0 // pred_check
    _
  $region15: #{finbert_regressor_forward.1} parent=0 // pred_check_branch
    %37 = sbr.rel (0) target = $region17
  $region16: #{finbert_regressor_forward.1} parent=0 // pred_region
    _
  $region17: #{finbert_regressor_forward.1} parent=0 // pred_fallthru
    _
  // Predicated region
  $region18: #{finbert_regressor_forward.1} parent=0 // pred_check
    _
  $region19: #{finbert_regressor_forward.1} parent=0 // pred_check_branch
    %39 = sbr.rel (0) target = $region21
  $region20: #{finbert_regressor_forward.1} parent=0 // pred_region
    _
  $region21: #{finbert_regressor_forward.1} parent=0 // pred_fallthru
    _
  // Predicated region
  $region22: #{finbert_regressor_forward.1} parent=0 // pred_check
    _
  $region23: #{finbert_regressor_forward.1} parent=0 // pred_check_branch
    %41 = sbr.rel (0) target = $region25
  $region24: #{finbert_regressor_forward.1} parent=0 // pred_region
    _
  $region25: #{finbert_regressor_forward.1} parent=0 // pred_fallthru
    _
  // Predicated region
  $region26: #{finbert_regressor_forward.1} parent=0 // pred_check
    _
  $region27: #{finbert_regressor_forward.1} parent=0 // pred_check_branch
    %43 = sbr.rel (0) target = $region29
  $region28: #{finbert_regressor_forward.1} parent=0 // pred_region
    _
  $region29: #{finbert_regressor_forward.1} parent=0 // pred_fallthru
    _
  // Predicated region
  $region30: #{finbert_regressor_forward.1} parent=0 // pred_check
    _
  $region31: #{finbert_regressor_forward.1} parent=0 // pred_check_branch
    %45 = sbr.rel (0) target = $region33
  $region32: #{finbert_regressor_forward.1} parent=0 // pred_region
    _
  $region33: #{finbert_regressor_forward.1} parent=0 // pred_fallthru
    _
  // Predicated region
  $region34: #{finbert_regressor_forward.1} parent=0 // pred_check
    _
  $region35: #{finbert_regressor_forward.1} parent=0 // pred_check_branch
    %47 = sbr.rel (0) target = $region37
  $region36: #{finbert_regressor_forward.1} parent=0 // pred_region
    _
  $region37: #{finbert_regressor_forward.1} parent=0 // pred_fallthru
    _
  // Predicated region
  $region38: #{finbert_regressor_forward.1} parent=0 // pred_check
    _
  $region39: #{finbert_regressor_forward.1} parent=0 // pred_check_branch
    %49 = sbr.rel (0) target = $region41
  $region40: #{finbert_regressor_forward.1} parent=0 // pred_region
    _
  $region41: #{finbert_regressor_forward.1} parent=0 // pred_fallthru
    _
  // Predicated region
  $region42: #{finbert_regressor_forward.1} parent=0 // pred_check
    _
  $region43: #{finbert_regressor_forward.1} parent=0 // pred_check_branch
    %51 = sbr.rel (0) target = $region45
  $region44: #{finbert_regressor_forward.1} parent=0 // pred_region
    _
  $region45: #{finbert_regressor_forward.1} parent=0 // pred_fallthru
    _
  // Predicated region
  $region46: #{finbert_regressor_forward.1} parent=0 // pred_check
    _
  $region47: #{finbert_regressor_forward.1} parent=0 // pred_check_branch
    %53 = sbr.rel (0) target = $region49
  $region48: #{finbert_regressor_forward.1} parent=0 // pred_region
    _
  $region49: #{finbert_regressor_forward.1} parent=0 // pred_fallthru
    _
  // Predicated region
  $region50: #{finbert_regressor_forward.1} parent=0 // pred_check
    _
  $region51: #{finbert_regressor_forward.1} parent=0 // pred_check_branch
    %55 = sbr.rel (0) target = $region53
  $region52: #{finbert_regressor_forward.1} parent=0 // pred_region
    _
  $region53: #{finbert_regressor_forward.1} parent=0 // pred_fallthru
    _
  // Predicated region
  $region54: #{finbert_regressor_forward.1} parent=0 // pred_check
    _
  $region55: #{finbert_regressor_forward.1} parent=0 // pred_check_branch
    %57 = sbr.rel (0) target = $region57
  $region56: #{finbert_regressor_forward.1} parent=0 // pred_region
    _
  $region57: #{finbert_regressor_forward.1} parent=0 // pred_fallthru
    _
  // Predicated region
  $region58: #{finbert_regressor_forward.1} parent=0 // pred_check
    _
  $region59: #{finbert_regressor_forward.1} parent=0 // pred_check_branch
    %59 = sbr.rel (0) target = $region61
  $region60: #{finbert_regressor_forward.1} parent=0 // pred_region
    _
  $region61: #{finbert_regressor_forward.1} parent=0 // pred_fallthru
    _
  // Predicated region
  $region62: #{finbert_regressor_forward.1} parent=0 // pred_check
    _
  $region63: #{finbert_regressor_forward.1} parent=0 // pred_check_branch
    %61 = sbr.rel (0) target = $region65
  $region64: #{finbert_regressor_forward.1} parent=0 // pred_region
    _
  $region65: #{finbert_regressor_forward.1} parent=0 // pred_fallthru
    _
  // Predicated region
  $region66: #{finbert_regressor_forward.1} parent=0 // pred_check
    _
  $region67: #{finbert_regressor_forward.1} parent=0 // pred_check_branch
    %63 = sbr.rel (0) target = $region69
  $region68: #{finbert_regressor_forward.1} parent=0 // pred_region
    _
  $region69: #{finbert_regressor_forward.1} parent=0 // pred_fallthru
    _
  // Predicated region
  $region70: #{finbert_regressor_forward.1} parent=0 // pred_check
    _
  $region71: #{finbert_regressor_forward.1} parent=0 // pred_check_branch
    %65 = sbr.rel (0) target = $region73
  $region72: #{finbert_regressor_forward.1} parent=0 // pred_region
    _
  $region73: #{finbert_regressor_forward.1} parent=0 // pred_fallthru
    _
  // Predicated region
  $region74: #{finbert_regressor_forward.1} parent=0 // pred_check
    _
  $region75: #{finbert_regressor_forward.1} parent=0 // pred_check_branch
    %67 = sbr.rel (0) target = $region77
  $region76: #{finbert_regressor_forward.1} parent=0 // pred_region
    _
  $region77: #{finbert_regressor_forward.1} parent=0 // pred_fallthru
    _
  // Predicated region
  $region78: #{finbert_regressor_forward.1} parent=0 // pred_check
    _
  $region79: #{finbert_regressor_forward.1} parent=0 // pred_check_branch
    %69 = sbr.rel (0) target = $region81
  $region80: #{finbert_regressor_forward.1} parent=0 // pred_region
    _
  $region81: #{finbert_regressor_forward.1} parent=0 // pred_fallthru
    _
  // Predicated region
  $region82: #{finbert_regressor_forward.1} parent=0 // pred_check
    _
  $region83: #{finbert_regressor_forward.1} parent=0 // pred_check_branch
    %71 = sbr.rel (0) target = $region85
  $region84: #{finbert_regressor_forward.1} parent=0 // pred_region
    _
  $region85: #{finbert_regressor_forward.1} parent=0 // pred_fallthru
    _
  // Predicated region
  $region86: #{finbert_regressor_forward.1} parent=0 // pred_check
    _
  $region87: #{finbert_regressor_forward.1} parent=0 // pred_check_branch
    %73 = sbr.rel (0) target = $region89
  $region88: #{finbert_regressor_forward.1} parent=0 // pred_region
    _
  $region89: #{finbert_regressor_forward.1} parent=0 // pred_fallthru
    _
  // Predicated region
  $region90: #{finbert_regressor_forward.1} parent=0 // pred_check
    _
  $region91: #{finbert_regressor_forward.1} parent=0 // pred_check_branch
    %75 = sbr.rel (0) target = $region93
  $region92: #{finbert_regressor_forward.1} parent=0 // pred_region
    _
  $region93: #{finbert_regressor_forward.1} parent=0 // pred_fallthru
    _
  %v77 = vld [vmem:[%s1] sm:$0xff]
  %v78 = vld [vmem:[%s1 + $0x8] sm:$0xff]
  %v79 = vld [vmem:[%s2] sm:$0x3]
  %v80 = vld [vmem:[%s0] sm:$0xff]
  %v81 = vld [vmem:[%s0 + $0x8] sm:$0xff]
  %v82 = vld [vmem:[%s3] sm:$0x1]
  %v83 = vld [vmem:[%s4] sm:$0x1]
  %vm84 = vcmask 261120
  %v85 = vsel %vm84, %v80, 0.0
  %86 = vadd.xlane.f32.xlu0 %v85
  %v87 = vpop.xlane.xlu0 %86
  %v88 = vsel %vm84, %v81, 0.0
  %89 = vadd.xlane.f32.xlu0 %v88
  %v90 = vpop.xlane.xlu0 %89
  %v91 = vrcp.pop 32.0
  %v92 = vmul.f32 32.0, %v91
  %v93 = vsub.f32 1.0, %v92
  %v94 = vmul.f32 %v91, %v93
  %v95 = vadd.f32 %v91, %v94
  %vm96 = vweird.f32 %v91
  %v97 = vsel %vm96, %v91, %v95
  %v98 = vmul.f32 %v87, %v97
  %v99 = vmul.f32 %v90, %v97
  %v100 = vsub.f32 %v80, %v98
  %v101 = vsub.f32 %v81, %v99
  %v102 = vmul.f32 %v100, %v100
  %v103 = vmul.f32 %v101, %v101
  %v104 = vsel %vm84, %v102, 0.0
  %105 = vadd.xlane.f32.xlu0 %v104
  %v106 = vpop.xlane.xlu0 %105
  %v107 = vsel %vm84, %v103, 0.0
  %108 = vadd.xlane.f32.xlu0 %v107
  %v109 = vpop.xlane.xlu0 %108
  %v110 = vmul.f32 %v106, %v97
  %v111 = vmul.f32 %v109, %v97
  %v112 = vadd.f32 %v110, 1e-12
  %v113 = vadd.f32 %v111, 1e-12
  %v114 = vrsqrt.pop %v112
  %v115 = vmul.f32 %v114, %v112
  %v116 = vmul.f32 %v115, %v114
  %v117 = vmul.f32 0.5, %v116
  %v118 = vsub.f32 1.5, %v117
  %v119 = vmul.f32 %v114, %v118
  %vm120 = vweird.f32 %v112
  %vm121 = vweird.f32 %v114
  %vm122 = vmor %vm120, %vm121
  %v123 = vsel %vm122, %v114, %v119
  %v124 = vrsqrt.pop %v113
  %v125 = vmul.f32 %v124, %v113
  %v126 = vmul.f32 %v125, %v124
  %v127 = vmul.f32 0.5, %v126
  %v128 = vsub.f32 1.5, %v127
  %v129 = vmul.f32 %v124, %v128
  %vm130 = vweird.f32 %v113
  %vm131 = vweird.f32 %v124
  %vm132 = vmor %vm130, %vm131
  %v133 = vsel %vm132, %v124, %v129
  %v134 = vmul.f32 %v100, %v123
  %v135 = vmul.f32 %v101, %v133
  %v137 = vperm.slane %v82, 0
  %v139 = vmul.f32 %v134, %v137
  %v140 = vmul.f32 %v135, %v137
  %v142 = vperm.slane %v83, 0
  %v144 = vadd.f32 %v139, %v142
  %v145 = vadd.f32 %v140, %v142
  %v146 = vpack.c.bf16 %v145, %v144
  %v147 = vld [vmem:[%s5] sm:$0xf]
  %v148 = vld [vmem:[%s5 + $0x4] sm:$0xf]
  %v149 = vld [vmem:[%s5 + $0x8] sm:$0xf]
  %v150 = vld [vmem:[%s5 + $0xc] sm:$0xf]
  %v151 = vld [vmem:[%s6] sm:$0x1]
  %v153 = vperm.slane %v151, 0
  %v159 = vunpack.c.l.b16 %v147
  %v160 = vunpack.c.l.b16 %v148
  %v161 = vunpack.c.l.b16 %v149
  %v162 = vunpack.c.l.b16 %v150
  %v163 = vpack.c.b16 %v160, %v159
  %v164 = vpack.c.b16 %v162, %v161
  %v168 = vsel %vm84, %v146, 0
  %170 = vmatpush.bf16.msra.mxu0 0
  %171 = vmatpush.bf16.msra.mxu0 0
  %172 = vmatpush.bf16.msra.mxu0 0
  %173 = vmatpush.bf16.msra.mxu0 0
  %174 = vmatpush.bf16.msra.mxu0 0
  %175 = vmatpush.bf16.msra.mxu0 0
  %176 = vmatpush.bf16.msra.mxu0 %v164
  %177 = vmatpush.bf16.msra.mxu0 %v163
  %178 = vmatmul.bf16.gmra.mxu0 %v168
  %v179 = vpop.f32.mrf.mxu0
  %v180 = vadd.f32 %v153, %v179
  %v181 = vpop.f32.mrf.mxu0
  %v182 = vadd.f32 %v153, %v181
  %183 = vdwg.mxu0
  %v184 = vpack.c.bf16 %v182, %v180
  %186 = vrot.lane.b32.xlu0 %v184, 96
  %v187 = vpop.permute.xlu0 %186
  %vm188 = vcmask 130048
  %v190 = vsel %vm188, %v184, 0
  %v193 = vsel %vm188, %v187, 0
  %195 = vmatpush.bf16.xpose.msra.mxu0 0
  %196 = vmatpush.bf16.xpose.msra.mxu0 0
  %197 = vmatpush.bf16.xpose.msra.mxu0 0
  %198 = vmatpush.bf16.xpose.msra.mxu0 0
  %199 = vmatpush.bf16.xpose.msra.mxu0 0
  %200 = vmatpush.bf16.xpose.msra.mxu0 0
  %201 = vmatpush.bf16.xpose.msra.mxu0 0
  %202 = vmatpush.bf16.xpose.msra.mxu0 %v193
  %203 = vmatmul.bf16.gmra.mxu0 %v190
  %v204 = vpop.f32.mrf.mxu0
  %v205 = vadd.f32 %v77, %v204
  %v206 = vpop.f32.mrf.mxu0
  %v207 = vadd.f32 %v78, %v206
  %208 = vdwg.mxu0
  %v209 = vsel %vm188, %v205, -inf
  %210 = vmax.xlane.f32.xlu0 %v209
  %v211 = vpop.xlane.xlu0 %210
  %v212 = vsel %vm188, %v207, -inf
  %213 = vmax.xlane.f32.xlu0 %v212
  %v214 = vpop.xlane.xlu0 %213
  %v215 = vsub.f32 %v205, %v211
  %v216 = vsub.f32 %v207, %v214
  %v217 = vmul.f32 %v215, 1.442695
  %v218 = vpow.pop %v217
  %v219 = vmul.f32 %v216, 1.442695
  %v220 = vpow.pop %v219
  %v221 = vsel %vm188, %v218, 0.0
  %222 = vadd.xlane.f32.xlu0 %v221
  %v223 = vpop.xlane.xlu0 %222
  %v224 = vsel %vm188, %v220, 0.0
  %225 = vadd.xlane.f32.xlu0 %v224
  %v226 = vpop.xlane.xlu0 %225
  %v227 = vrcp.pop %v223
  %v228 = vrcp.pop %v226
  %v229 = vmul.f32 %v218, %v227
  %v230 = vmul.f32 %v220, %v228
  %v231 = vpack.c.bf16 %v230, %v229
  %232 = vrot.lane.b32.xlu0 %v184, 64
  %v233 = vpop.permute.xlu0 %232
  %v236 = vsel %vm188, %v231, 0
  %238 = vmatpush.bf16.msra.mxu0 0
  %239 = vmatpush.bf16.msra.mxu0 0
  %240 = vmatpush.bf16.msra.mxu0 0
  %241 = vmatpush.bf16.msra.mxu0 0
  %242 = vmatpush.bf16.msra.mxu0 0
  %243 = vmatpush.bf16.msra.mxu0 0
  %244 = vmatpush.bf16.msra.mxu0 0
  %245 = vmatpush.bf16.msra.mxu0 %v233
  %246 = vmatmul.bf16.gmra.mxu0 %v236
  %v247 = vpop.f32.mrf.mxu0
  %v248 = vadd.f32 0.0, %v247
  %v249 = vpop.f32.mrf.mxu0
  %v250 = vadd.f32 0.0, %v249
  %251 = vdwg.mxu0
  %252 = vrot.lane.b32.xlu0 %v184, 112
  %v253 = vpop.permute.xlu0 %252
  %254 = vrot.lane.b32.xlu0 %v184, 80
  %v255 = vpop.permute.xlu0 %254
  %v257 = vsel %vm188, %v253, 0
  %v260 = vsel %vm188, %v255, 0
  %262 = vmatpush.bf16.xpose.msra.mxu0 0
  %263 = vmatpush.bf16.xpose.msra.mxu0 0
  %264 = vmatpush.bf16.xpose.msra.mxu0 0
  %265 = vmatpush.bf16.xpose.msra.mxu0 0
  %266 = vmatpush.bf16.xpose.msra.mxu0 0
  %267 = vmatpush.bf16.xpose.msra.mxu0 0
  %268 = vmatpush.bf16.xpose.msra.mxu0 0
  %269 = vmatpush.bf16.xpose.msra.mxu0 %v260
  %270 = vmatmul.bf16.gmra.mxu0 %v257
  %v271 = vpop.f32.mrf.mxu0
  %v272 = vadd.f32 %v77, %v271
  %v273 = vpop.f32.mrf.mxu0
  %v274 = vadd.f32 %v78, %v273
  %275 = vdwg.mxu0
  %v276 = vsel %vm188, %v272, -inf
  %277 = vmax.xlane.f32.xlu0 %v276
  %v278 = vpop.xlane.xlu0 %277
  %v279 = vsel %vm188, %v274, -inf
  %280 = vmax.xlane.f32.xlu0 %v279
  %v281 = vpop.xlane.xlu0 %280
  %v282 = vsub.f32 %v272, %v278
  %v283 = vsub.f32 %v274, %v281
  %v284 = vmul.f32 %v282, 1.442695
  %v285 = vpow.pop %v284
  %v286 = vmul.f32 %v283, 1.442695
  %v287 = vpow.pop %v286
  %v288 = vsel %vm188, %v285, 0.0
  %289 = vadd.xlane.f32.xlu0 %v288
  %v290 = vpop.xlane.xlu0 %289
  %v291 = vsel %vm188, %v287, 0.0
  %292 = vadd.xlane.f32.xlu0 %v291
  %v293 = vpop.xlane.xlu0 %292
  %v294 = vrcp.pop %v290
  %v295 = vrcp.pop %v293
  %v296 = vmul.f32 %v285, %v294
  %v297 = vmul.f32 %v287, %v295
  %v298 = vpack.c.bf16 %v297, %v296
  %299 = vrot.lane.b32.xlu0 %v184, 48
  %v300 = vpop.permute.xlu0 %299
  %v303 = vsel %vm188, %v298, 0
  %305 = vmatpush.bf16.msra.mxu0 0
  %306 = vmatpush.bf16.msra.mxu0 0
  %307 = vmatpush.bf16.msra.mxu0 0
  %308 = vmatpush.bf16.msra.mxu0 0
  %309 = vmatpush.bf16.msra.mxu0 0
  %310 = vmatpush.bf16.msra.mxu0 0
  %311 = vmatpush.bf16.msra.mxu0 0
  %312 = vmatpush.bf16.msra.mxu0 %v300
  %313 = vmatmul.bf16.gmra.mxu0 %v303
  %v314 = vpop.f32.mrf.mxu0
  %v315 = vadd.f32 0.0, %v314
  %v316 = vpop.f32.mrf.mxu0
  %v317 = vadd.f32 0.0, %v316
  %318 = vdwg.mxu0
  %321 = vrot.lane.b32.xlu0 %v315, 16
  %v322 = vpop.permute.xlu0 %321
  %323 = vrot.lane.b32.xlu0 %v317, 16
  %v324 = vpop.permute.xlu0 %323
  %v327 = vsel %vm188, %v248, %v322
  %v328 = vsel %vm188, %v250, %v324
  %v329 = vpack.c.bf16 %v328, %v327
  %v330 = vld [vmem:[%s11] sm:$0xf]
  %v331 = vld [vmem:[%s11 + $0x4] sm:$0xf]
  %v332 = vld [vmem:[%s11 + $0x8] sm:$0xf]
  %v333 = vld [vmem:[%s11 + $0xc] sm:$0xf]
  %v334 = vld [vmem:[%s12] sm:$0x1]
  %v336 = vperm.slane %v334, 0
  %v342 = vunpack.c.l.b16 %v330
  %v343 = vunpack.c.l.b16 %v331
  %v344 = vunpack.c.l.b16 %v332
  %v345 = vunpack.c.l.b16 %v333
  %v346 = vpack.c.b16 %v343, %v342
  %v347 = vpack.c.b16 %v345, %v344
  %v351 = vsel %vm84, %v329, 0
  %353 = vmatpush.bf16.msra.mxu0 0
  %354 = vmatpush.bf16.msra.mxu0 0
  %355 = vmatpush.bf16.msra.mxu0 0
  %356 = vmatpush.bf16.msra.mxu0 0
  %357 = vmatpush.bf16.msra.mxu0 0
  %358 = vmatpush.bf16.msra.mxu0 0
  %359 = vmatpush.bf16.msra.mxu0 %v347
  %360 = vmatpush.bf16.msra.mxu0 %v346
  %361 = vmatmul.bf16.gmra.mxu0 %v351
  %v362 = vpop.f32.mrf.mxu0
  %v363 = vadd.f32 %v336, %v362
  %v364 = vpop.f32.mrf.mxu0
  %v365 = vadd.f32 %v336, %v364
  %366 = vdwg.mxu0
  %v367 = vadd.f32 %v144, %v363
  %v368 = vadd.f32 %v145, %v365
  %v369 = vld [vmem:[%s13] sm:$0x1]
  %v370 = vld [vmem:[%s14] sm:$0x1]
  %v371 = vsel %vm84, %v367, 0.0
  %372 = vadd.xlane.f32.xlu0 %v371
  %v373 = vpop.xlane.xlu0 %372
  %v374 = vsel %vm84, %v368, 0.0
  %375 = vadd.xlane.f32.xlu0 %v374
  %v376 = vpop.xlane.xlu0 %375
  %v377 = vmul.f32 %v373, %v97
  %v378 = vmul.f32 %v376, %v97
  %v379 = vsub.f32 %v367, %v377
  %v380 = vsub.f32 %v368, %v378
  %v381 = vmul.f32 %v379, %v379
  %v382 = vmul.f32 %v380, %v380
  %v383 = vsel %vm84, %v381, 0.0
  %384 = vadd.xlane.f32.xlu0 %v383
  %v385 = vpop.xlane.xlu0 %384
  %v386 = vsel %vm84, %v382, 0.0
  %387 = vadd.xlane.f32.xlu0 %v386
  %v388 = vpop.xlane.xlu0 %387
  %v389 = vmul.f32 %v385, %v97
  %v390 = vmul.f32 %v388, %v97
  %v391 = vadd.f32 %v389, 1e-12
  %v392 = vadd.f32 %v390, 1e-12
  %v393 = vrsqrt.pop %v391
  %v394 = vmul.f32 %v393, %v391
  %v395 = vmul.f32 %v394, %v393
  %v396 = vmul.f32 0.5, %v395
  %v397 = vsub.f32 1.5, %v396
  %v398 = vmul.f32 %v393, %v397
  %vm399 = vweird.f32 %v391
  %vm400 = vweird.f32 %v393
  %vm401 = vmor %vm399, %vm400
  %v402 = vsel %vm401, %v393, %v398
  %v403 = vrsqrt.pop %v392
  %v404 = vmul.f32 %v403, %v392
  %v405 = vmul.f32 %v404, %v403
  %v406 = vmul.f32 0.5, %v405
  %v407 = vsub.f32 1.5, %v406
  %v408 = vmul.f32 %v403, %v407
  %vm409 = vweird.f32 %v392
  %vm410 = vweird.f32 %v403
  %vm411 = vmor %vm409, %vm410
  %v412 = vsel %vm411, %v403, %v408
  %v413 = vmul.f32 %v379, %v402
  %v414 = vmul.f32 %v380, %v412
  %v416 = vperm.slane %v369, 0
  %v418 = vmul.f32 %v413, %v416
  %v419 = vmul.f32 %v414, %v416
  %v421 = vperm.slane %v370, 0
  %v423 = vadd.f32 %v418, %v421
  %v424 = vadd.f32 %v419, %v421
  %v425 = vpack.c.bf16 %v424, %v423
  %v426 = vld [vmem:[%s15] sm:$0xf]
  %v427 = vld [vmem:[%s15 + $0x4] sm:$0xf]
  %v428 = vld [vmem:[%s15 + $0x8] sm:$0xf]
  %v429 = vld [vmem:[%s15 + $0xc] sm:$0xf]
  %v430 = vld [vmem:[%s16] sm:$0x1]
  %v432 = vperm.slane %v430, 0
  %v438 = vunpack.c.l.b16 %v426
  %v439 = vunpack.c.l.b16 %v427
  %v440 = vunpack.c.l.b16 %v428
  %v441 = vunpack.c.l.b16 %v429
  %v442 = vpack.c.b16 %v439, %v438
  %v443 = vpack.c.b16 %v441, %v440
  %v447 = vsel %vm84, %v425, 0
  %449 = vmatpush.bf16.msra.mxu0 0
  %450 = vmatpush.bf16.msra.mxu0 0
  %451 = vmatpush.bf16.msra.mxu0 0
  %452 = vmatpush.bf16.msra.mxu0 0
  %453 = vmatpush.bf16.msra.mxu0 0
  %454 = vmatpush.bf16.msra.mxu0 0
  %455 = vmatpush.bf16.msra.mxu0 %v443
  %456 = vmatpush.bf16.msra.mxu0 %v442
  %457 = vmatmul.bf16.gmra.mxu0 %v447
  %v458 = vpop.f32.mrf.mxu0
  %v459 = vadd.f32 %v432, %v458
  %v460 = vpop.f32.mrf.mxu0
  %v461 = vadd.f32 %v432, %v460
  %462 = vdwg.mxu0
  %v463 = vmul.f32 %v459, 0.5
  %v464 = vmul.f32 %v461, 0.5
  %v465 = vmul.f32 %v459, 0.044715
  %v466 = vmul.f32 %v461, 0.044715
  %v467 = vmul.f32 %v465, %v459
  %v468 = vmul.f32 %v466, %v461
  %v469 = vmul.f32 %v467, %v459
  %v470 = vmul.f32 %v468, %v461
  %v471 = vadd.f32 %v459, %v469
  %v472 = vadd.f32 %v461, %v470
  %v473 = vmul.f32 %v471, 0.7978846
  %v474 = vmul.f32 %v472, 0.7978846
  %v475 = vtanh.pop %v473
  %v476 = vtanh.pop %v474
  %v477 = vadd.f32 %v475, 1.0
  %v478 = vadd.f32 %v476, 1.0
  %v479 = vmul.f32 %v463, %v477
  %v480 = vmul.f32 %v464, %v478
  %v481 = vpack.c.bf16 %v480, %v479
  %v482 = vld [vmem:[%s17] sm:$0xf]
  %v483 = vld [vmem:[%s17 + $0x4] sm:$0xf]
  %v484 = vld [vmem:[%s17 + $0x8] sm:$0xf]
  %v485 = vld [vmem:[%s17 + $0xc] sm:$0xf]
  %v486 = vld [vmem:[%s17 + $0x10] sm:$0xf]
  %v487 = vld [vmem:[%s17 + $0x14] sm:$0xf]
  %v488 = vld [vmem:[%s17 + $0x18] sm:$0xf]
  %v489 = vld [vmem:[%s17 + $0x1c] sm:$0xf]
  %v490 = vld [vmem:[%s18] sm:$0x1]
  %v492 = vperm.slane %v490, 0
  %v502 = vunpack.c.l.b16 %v482
  %v503 = vunpack.c.l.b16 %v483
  %v504 = vunpack.c.l.b16 %v484
  %v505 = vunpack.c.l.b16 %v485
  %v506 = vunpack.c.l.b16 %v486
  %v507 = vunpack.c.l.b16 %v487
  %v508 = vunpack.c.l.b16 %v488
  %v509 = vunpack.c.l.b16 %v489
  %v510 = vpack.c.b16 %v503, %v502
  %v511 = vpack.c.b16 %v505, %v504
  %v512 = vpack.c.b16 %v507, %v506
  %v513 = vpack.c.b16 %v509, %v508
  %vm518 = vcmask 523264
  %v520 = vsel %vm518, %v481, 0
  %522 = vmatpush.bf16.msra.mxu0 0
  %523 = vmatpush.bf16.msra.mxu0 0
  %524 = vmatpush.bf16.msra.mxu0 0
  %525 = vmatpush.bf16.msra.mxu0 0
  %526 = vmatpush.bf16.msra.mxu0 %v513
  %527 = vmatpush.bf16.msra.mxu0 %v512
  %528 = vmatpush.bf16.msra.mxu0 %v511
  %529 = vmatpush.bf16.msra.mxu0 %v510
  %530 = vmatmul.bf16.gmra.mxu0 %v520
  %v531 = vpop.f32.mrf.mxu0
  %v532 = vadd.f32 %v492, %v531
  %v533 = vpop.f32.mrf.mxu0
  %v534 = vadd.f32 %v492, %v533
  %535 = vdwg.mxu0
  %v536 = vadd.f32 %v423, %v532
  %v537 = vadd.f32 %v424, %v534
  %v538 = vld [vmem:[%s19] sm:$0x1]
  %v539 = vld [vmem:[%s20] sm:$0x1]
  %v540 = vsel %vm84, %v536, 0.0
  %541 = vadd.xlane.f32.xlu0 %v540
  %v542 = vpop.xlane.xlu0 %541
  %v543 = vsel %vm84, %v537, 0.0
  %544 = vadd.xlane.f32.xlu0 %v543
  %v545 = vpop.xlane.xlu0 %544
  %v546 = vmul.f32 %v542, %v97
  %v547 = vmul.f32 %v545, %v97
  %v548 = vsub.f32 %v536, %v546
  %v549 = vsub.f32 %v537, %v547
  %v550 = vmul.f32 %v548, %v548
  %v551 = vmul.f32 %v549, %v549
  %v552 = vsel %vm84, %v550, 0.0
  %553 = vadd.xlane.f32.xlu0 %v552
  %v554 = vpop.xlane.xlu0 %553
  %v555 = vsel %vm84, %v551, 0.0
  %556 = vadd.xlane.f32.xlu0 %v555
  %v557 = vpop.xlane.xlu0 %556
  %v558 = vmul.f32 %v554, %v97
  %v559 = vmul.f32 %v557, %v97
  %v560 = vadd.f32 %v558, 1e-12
  %v561 = vadd.f32 %v559, 1e-12
  %v562 = vrsqrt.pop %v560
  %v563 = vmul.f32 %v562, %v560
  %v564 = vmul.f32 %v563, %v562
  %v565 = vmul.f32 0.5, %v564
  %v566 = vsub.f32 1.5, %v565
  %v567 = vmul.f32 %v562, %v566
  %vm568 = vweird.f32 %v560
  %vm569 = vweird.f32 %v562
  %vm570 = vmor %vm568, %vm569
  %v571 = vsel %vm570, %v562, %v567
  %v572 = vrsqrt.pop %v561
  %v573 = vmul.f32 %v572, %v561
  %v574 = vmul.f32 %v573, %v572
  %v575 = vmul.f32 0.5, %v574
  %v576 = vsub.f32 1.5, %v575
  %v577 = vmul.f32 %v572, %v576
  %vm578 = vweird.f32 %v561
  %vm579 = vweird.f32 %v572
  %vm580 = vmor %vm578, %vm579
  %v581 = vsel %vm580, %v572, %v577
  %v582 = vmul.f32 %v548, %v571
  %v583 = vmul.f32 %v549, %v581
  %v585 = vperm.slane %v538, 0
  %v587 = vmul.f32 %v582, %v585
  %v588 = vmul.f32 %v583, %v585
  %v590 = vperm.slane %v539, 0
  %v592 = vadd.f32 %v587, %v590
  %v593 = vadd.f32 %v588, %v590
  %594 = vst.msk [vmem:[#allocation2] sm:$0xff] %vm84, %v592
  %595 = vst.msk [vmem:[#allocation2 + $0x8] sm:$0xff] %vm84, %v593
  %v596 = vld [vmem:[#allocation2] ss:$8 sm:$0x3]
  %v597 = vpack.c.bf16 %v593, %v592
  %v598 = vld [vmem:[%s9] sm:$0xf]
  %v599 = vld [vmem:[%s9 + $0x4] sm:$0xf]
  %v600 = vld [vmem:[%s9 + $0x8] sm:$0xf]
  %v601 = vld [vmem:[%s9 + $0xc] sm:$0xf]
  %v602 = vld [vmem:[%s10] sm:$0x1]
  %v604 = vperm.slane %v602, 0
  %v610 = vunpack.c.l.b16 %v598
  %v611 = vunpack.c.l.b16 %v599
  %v612 = vunpack.c.l.b16 %v600
  %v613 = vunpack.c.l.b16 %v601
  %v614 = vpack.c.b16 %v611, %v610
  %v615 = vpack.c.b16 %v613, %v612
  %v619 = vsel %vm84, %v597, 0
  %621 = vmatpush.bf16.msra.mxu0 0
  %622 = vmatpush.bf16.msra.mxu0 0
  %623 = vmatpush.bf16.msra.mxu0 0
  %624 = vmatpush.bf16.msra.mxu0 0
  %625 = vmatpush.bf16.msra.mxu0 0
  %626 = vmatpush.bf16.msra.mxu0 0
  %627 = vmatpush.bf16.msra.mxu0 %v615
  %628 = vmatpush.bf16.msra.mxu0 %v614
  %629 = vmatmul.bf16.gmra.mxu0 %v619
  %v630 = vpop.f32.mrf.mxu0
  %v631 = vadd.f32 %v604, %v630
  %v632 = vpop.f32.mrf.mxu0
  %v633 = vadd.f32 %v604, %v632
  %634 = vdwg.mxu0
  %v635 = vpack.c.bf16 %v596, %v596
  %v636 = vld [vmem:[%s7] sm:$0xf]
  %v637 = vld [vmem:[%s7 + $0x4] sm:$0xf]
  %v638 = vld [vmem:[%s7 + $0x8] sm:$0xf]
  %v639 = vld [vmem:[%s7 + $0xc] sm:$0xf]
  %v640 = vld [vmem:[%s8] sm:$0x1]
  %v642 = vperm.slane %v640, 0
  %v648 = vunpack.c.l.b16 %v636
  %v649 = vunpack.c.l.b16 %v637
  %v650 = vunpack.c.l.b16 %v638
  %v651 = vunpack.c.l.b16 %v639
  %v652 = vpack.c.b16 %v649, %v648
  %v653 = vpack.c.b16 %v651, %v650
  %v657 = vsel %vm84, %v635, 0
  %659 = vmatpush.bf16.msra.mxu0 0
  %660 = vmatpush.bf16.msra.mxu0 0
  %661 = vmatpush.bf16.msra.mxu0 0
  %662 = vmatpush.bf16.msra.mxu0 0
  %663 = vmatpush.bf16.msra.mxu0 0
  %664 = vmatpush.bf16.msra.mxu0 0
  %665 = vmatpush.bf16.msra.mxu0 %v653
  %666 = vmatpush.bf16.msra.mxu0 %v652
  %667 = vmatmul.bf16.gmra.mxu0 %v657
  %v668 = vpop.f32.mrf.mxu0
  %v669 = vadd.f32 %v642, %v668
  %v670 = vpop.f32.mrf.mxu0
  %671 = vdwg.mxu0
  %v672 = vpack.c.bf16 %v669, %v669
  %v673 = vpack.c.bf16 %v633, %v631
  %v675 = vsel %vm188, %v672, 0
  %v678 = vsel %vm188, %v673, 0
  %680 = vmatpush.bf16.xpose.msra.mxu0 0
  %681 = vmatpush.bf16.xpose.msra.mxu0 0
  %682 = vmatpush.bf16.xpose.msra.mxu0 0
  %683 = vmatpush.bf16.xpose.msra.mxu0 0
  %684 = vmatpush.bf16.xpose.msra.mxu0 0
  %685 = vmatpush.bf16.xpose.msra.mxu0 0
  %686 = vmatpush.bf16.xpose.msra.mxu0 0
  %687 = vmatpush.bf16.xpose.msra.mxu0 %v678
  %688 = vmatmul.bf16.gmra.mxu0 %v675
  %v689 = vpop.f32.mrf.mxu0
  %v690 = vadd.f32 %v79, %v689
  %v691 = vpop.f32.mrf.mxu0
  %692 = vdwg.mxu0
  %vm693 = vcmask 123904
  %v694 = vsel %vm693, %v690, -inf
  %695 = vmax.xlane.f32.xlu0 %v694
  %v696 = vpop.xlane.xlu0 %695
  %v697 = vsub.f32 %v690, %v696
  %v698 = vmul.f32 %v697, 1.442695
  %v699 = vpow.pop %v698
  %v700 = vsel %vm693, %v699, 0.0
  %701 = vadd.xlane.f32.xlu0 %v700
  %v702 = vpop.xlane.xlu0 %701
  %v703 = vrcp.pop %v702
  %v704 = vmul.f32 %v699, %v703
  %v705 = vpack.c.bf16 %v704, %v704
  %707 = vrot.lane.b32.xlu0 %v673, 96
  %v708 = vpop.permute.xlu0 %707
  %v711 = vsel %vm188, %v705, 0
  %713 = vmatpush.bf16.msra.mxu0 0
  %714 = vmatpush.bf16.msra.mxu0 0
  %715 = vmatpush.bf16.msra.mxu0 0
  %716 = vmatpush.bf16.msra.mxu0 0
  %717 = vmatpush.bf16.msra.mxu0 0
  %718 = vmatpush.bf16.msra.mxu0 0
  %719 = vmatpush.bf16.msra.mxu0 0
  %720 = vmatpush.bf16.msra.mxu0 %v708
  %721 = vmatmul.bf16.gmra.mxu0 %v711
  %v722 = vpop.f32.mrf.mxu0
  %v723 = vadd.f32 0.0, %v722
  %v724 = vpop.f32.mrf.mxu0
  %725 = vdwg.mxu0
  %727 = vrot.lane.b32.xlu0 %v672, 112
  %v728 = vpop.permute.xlu0 %727
  %729 = vrot.lane.b32.xlu0 %v673, 112
  %v730 = vpop.permute.xlu0 %729
  %v732 = vsel %vm188, %v728, 0
  %v735 = vsel %vm188, %v730, 0
  %737 = vmatpush.bf16.xpose.msra.mxu0 0
  %738 = vmatpush.bf16.xpose.msra.mxu0 0
  %739 = vmatpush.bf16.xpose.msra.mxu0 0
  %740 = vmatpush.bf16.xpose.msra.mxu0 0
  %741 = vmatpush.bf16.xpose.msra.mxu0 0
  %742 = vmatpush.bf16.xpose.msra.mxu0 0
  %743 = vmatpush.bf16.xpose.msra.mxu0 0
  %744 = vmatpush.bf16.xpose.msra.mxu0 %v735
  %745 = vmatmul.bf16.gmra.mxu0 %v732
  %v746 = vpop.f32.mrf.mxu0
  %v747 = vadd.f32 %v79, %v746
  %v748 = vpop.f32.mrf.mxu0
  %749 = vdwg.mxu0
  %v750 = vsel %vm693, %v747, -inf
  %751 = vmax.xlane.f32.xlu0 %v750
  %v752 = vpop.xlane.xlu0 %751
  %v753 = vsub.f32 %v747, %v752
  %v754 = vmul.f32 %v753, 1.442695
  %v755 = vpow.pop %v754
  %v756 = vsel %vm693, %v755, 0.0
  %757 = vadd.xlane.f32.xlu0 %v756
  %v758 = vpop.xlane.xlu0 %757
  %v759 = vrcp.pop %v758
  %v760 = vmul.f32 %v755, %v759
  %v761 = vpack.c.bf16 %v760, %v760
  %762 = vrot.lane.b32.xlu0 %v673, 80
  %v763 = vpop.permute.xlu0 %762
  %v766 = vsel %vm188, %v761, 0
  %768 = vmatpush.bf16.msra.mxu0 0
  %769 = vmatpush.bf16.msra.mxu0 0
  %770 = vmatpush.bf16.msra.mxu0 0
  %771 = vmatpush.bf16.msra.mxu0 0
  %772 = vmatpush.bf16.msra.mxu0 0
  %773 = vmatpush.bf16.msra.mxu0 0
  %774 = vmatpush.bf16.msra.mxu0 0
  %775 = vmatpush.bf16.msra.mxu0 %v763
  %776 = vmatmul.bf16.gmra.mxu0 %v766
  %v777 = vpop.f32.mrf.mxu0
  %v778 = vadd.f32 0.0, %v777
  %v779 = vpop.f32.mrf.mxu0
  %780 = vdwg.mxu0
  %782 = vrot.lane.b32.xlu0 %v778, 16
  %v783 = vpop.permute.xlu0 %782
  %v785 = vsel %vm188, %v723, %v783
  %v786 = vpack.c.bf16 %v785, %v785
  %s787 = scalar_lea.vmem %s11, 16
  %v788 = vld [vmem:[%s787] sm:$0xf]
  %v789 = vld [vmem:[%s787 + $0x4] sm:$0xf]
  %v790 = vld [vmem:[%s787 + $0x8] sm:$0xf]
  %v791 = vld [vmem:[%s787 + $0xc] sm:$0xf]
  %s792 = scalar_lea.vmem %s12, 1
  %v793 = vld [vmem:[%s792] sm:$0x1]
  %v795 = vperm.slane %v793, 0
  %v801 = vunpack.c.l.b16 %v788
  %v802 = vunpack.c.l.b16 %v789
  %v803 = vunpack.c.l.b16 %v790
  %v804 = vunpack.c.l.b16 %v791
  %v805 = vpack.c.b16 %v802, %v801
  %v806 = vpack.c.b16 %v804, %v803
  %v810 = vsel %vm84, %v786, 0
  %812 = vmatpush.bf16.msra.mxu0 0
  %813 = vmatpush.bf16.msra.mxu0 0
  %814 = vmatpush.bf16.msra.mxu0 0
  %815 = vmatpush.bf16.msra.mxu0 0
  %816 = vmatpush.bf16.msra.mxu0 0
  %817 = vmatpush.bf16.msra.mxu0 0
  %818 = vmatpush.bf16.msra.mxu0 %v806
  %819 = vmatpush.bf16.msra.mxu0 %v805
  %820 = vmatmul.bf16.gmra.mxu0 %v810
  %v821 = vpop.f32.mrf.mxu0
  %v822 = vadd.f32 %v795, %v821
  %v823 = vpop.f32.mrf.mxu0
  %824 = vdwg.mxu0
  %v825 = vadd.f32 %v596, %v822
  %s826 = scalar_lea.vmem %s13, 1
  %v827 = vld [vmem:[%s826] sm:$0x1]
  %s828 = scalar_lea.vmem %s14, 1
  %v829 = vld [vmem:[%s828] sm:$0x1]
  %vm830 = vcmask 254976
  %v831 = vsel %vm830, %v825, 0.0
  %832 = vadd.xlane.f32.xlu0 %v831
  %v833 = vpop.xlane.xlu0 %832
  %v834 = vmul.f32 %v833, %v97
  %v835 = vsub.f32 %v825, %v834
  %v836 = vmul.f32 %v835, %v835
  %v837 = vsel %vm830, %v836, 0.0
  %838 = vadd.xlane.f32.xlu0 %v837
  %v839 = vpop.xlane.xlu0 %838
  %v840 = vmul.f32 %v839, %v97
  %v841 = vadd.f32 %v840, 1e-12
  %v842 = vrsqrt.pop %v841
  %v843 = vmul.f32 %v842, %v841
  %v844 = vmul.f32 %v843, %v842
  %v845 = vmul.f32 0.5, %v844
  %v846 = vsub.f32 1.5, %v845
  %v847 = vmul.f32 %v842, %v846
  %vm848 = vweird.f32 %v841
  %vm849 = vweird.f32 %v842
  %vm850 = vmor %vm848, %vm849
  %v851 = vsel %vm850, %v842, %v847
  %v852 = vmul.f32 %v835, %v851
  %v854 = vperm.slane %v827, 0
  %v856 = vmul.f32 %v852, %v854
  %v858 = vperm.slane %v829, 0
  %v860 = vadd.f32 %v856, %v858
  %v861 = vpack.c.bf16 %v860, %v860
  %s862 = scalar_lea.vmem %s15, 16
  %v863 = vld [vmem:[%s862] sm:$0xf]
  %v864 = vld [vmem:[%s862 + $0x4] sm:$0xf]
  %v865 = vld [vmem:[%s862 + $0x8] sm:$0xf]
  %v866 = vld [vmem:[%s862 + $0xc] sm:$0xf]
  %s867 = scalar_lea.vmem %s16, 1
  %v868 = vld [vmem:[%s867] sm:$0x1]
  %v870 = vperm.slane %v868, 0
  %v876 = vunpack.c.l.b16 %v863
  %v877 = vunpack.c.l.b16 %v864
  %v878 = vunpack.c.l.b16 %v865
  %v879 = vunpack.c.l.b16 %v866
  %v880 = vpack.c.b16 %v877, %v876
  %v881 = vpack.c.b16 %v879, %v878
  %v885 = vsel %vm84, %v861, 0
  %887 = vmatpush.bf16.msra.mxu0 0
  %888 = vmatpush.bf16.msra.mxu0 0
  %889 = vmatpush.bf16.msra.mxu0 0
  %890 = vmatpush.bf16.msra.mxu0 0
  %891 = vmatpush.bf16.msra.mxu0 0
  %892 = vmatpush.bf16.msra.mxu0 0
  %893 = vmatpush.bf16.msra.mxu0 %v881
  %894 = vmatpush.bf16.msra.mxu0 %v880
  %895 = vmatmul.bf16.gmra.mxu0 %v885
  %v896 = vpop.f32.mrf.mxu0
  %v897 = vadd.f32 %v870, %v896
  %v898 = vpop.f32.mrf.mxu0
  %899 = vdwg.mxu0
  %v900 = vmul.f32 %v897, 0.5
  %v901 = vmul.f32 %v897, 0.044715
  %v902 = vmul.f32 %v901, %v897
  %v903 = vmul.f32 %v902, %v897
  %v904 = vadd.f32 %v897, %v903
  %v905 = vmul.f32 %v904, 0.7978846
  %v906 = vtanh.pop %v905
  %v907 = vadd.f32 %v906, 1.0
  %v908 = vmul.f32 %v900, %v907
  %v909 = vpack.c.bf16 %v908, %v908
  %s910 = scalar_lea.vmem %s17, 32
  %v911 = vld [vmem:[%s910] sm:$0xf]
  %v912 = vld [vmem:[%s910 + $0x4] sm:$0xf]
  %v913 = vld [vmem:[%s910 + $0x8] sm:$0xf]
  %v914 = vld [vmem:[%s910 + $0xc] sm:$0xf]
  %v915 = vld [vmem:[%s910 + $0x10] sm:$0xf]
  %v916 = vld [vmem:[%s910 + $0x14] sm:$0xf]
  %v917 = vld [vmem:[%s910 + $0x18] sm:$0xf]
  %v918 = vld [vmem:[%s910 + $0x1c] sm:$0xf]
  %s919 = scalar_lea.vmem %s18, 1
  %v920 = vld [vmem:[%s919] sm:$0x1]
  %v922 = vperm.slane %v920, 0
  %v932 = vunpack.c.l.b16 %v911
  %v933 = vunpack.c.l.b16 %v912
  %v934 = vunpack.c.l.b16 %v913
  %v935 = vunpack.c.l.b16 %v914
  %v936 = vunpack.c.l.b16 %v915
  %v937 = vunpack.c.l.b16 %v916
  %v938 = vunpack.c.l.b16 %v917
  %v939 = vunpack.c.l.b16 %v918
  %v940 = vpack.c.b16 %v933, %v932
  %v941 = vpack.c.b16 %v935, %v934
  %v942 = vpack.c.b16 %v937, %v936
  %v943 = vpack.c.b16 %v939, %v938
  %v949 = vsel %vm518, %v909, 0
  %951 = vmatpush.bf16.msra.mxu0 0
  %952 = vmatpush.bf16.msra.mxu0 0
  %953 = vmatpush.bf16.msra.mxu0 0
  %954 = vmatpush.bf16.msra.mxu0 0
  %955 = vmatpush.bf16.msra.mxu0 %v943
  %956 = vmatpush.bf16.msra.mxu0 %v942
  %957 = vmatpush.bf16.msra.mxu0 %v941
  %958 = vmatpush.bf16.msra.mxu0 %v940
  %959 = vmatmul.bf16.gmra.mxu0 %v949
  %v960 = vpop.f32.mrf.mxu0
  %v961 = vadd.f32 %v922, %v960
  %v962 = vpop.f32.mrf.mxu0
  %963 = vdwg.mxu0
  %v964 = vadd.f32 %v860, %v961
  %s965 = scalar_lea.vmem %s19, 1
  %v966 = vld [vmem:[%s965] sm:$0x1]
  %s967 = scalar_lea.vmem %s20, 1
  %v968 = vld [vmem:[%s967] sm:$0x1]
  %v969 = vsel %vm830, %v964, 0.0
  %970 = vadd.xlane.f32.xlu0 %v969
  %v971 = vpop.xlane.xlu0 %970
  %v972 = vmul.f32 %v971, %v97
  %v973 = vsub.f32 %v964, %v972
  %v974 = vmul.f32 %v973, %v973
  %v975 = vsel %vm830, %v974, 0.0
  %976 = vadd.xlane.f32.xlu0 %v975
  %v977 = vpop.xlane.xlu0 %976
  %v978 = vmul.f32 %v977, %v97
  %v979 = vadd.f32 %v978, 1e-12
  %v980 = vrsqrt.pop %v979
  %v981 = vmul.f32 %v980, %v979
  %v982 = vmul.f32 %v981, %v980
  %v983 = vmul.f32 0.5, %v982
  %v984 = vsub.f32 1.5, %v983
  %v985 = vmul.f32 %v980, %v984
  %vm986 = vweird.f32 %v979
  %vm987 = vweird.f32 %v980
  %vm988 = vmor %vm986, %vm987
  %v989 = vsel %vm988, %v980, %v985
  %v990 = vmul.f32 %v973, %v989
  %v992 = vperm.slane %v966, 0
  %v994 = vmul.f32 %v990, %v992
  %v996 = vperm.slane %v968, 0
  %v998 = vadd.f32 %v994, %v996
  %v999 = vld [vmem:[%s21] sm:$0x1]
  %v1001 = vperm.slane %v999, 0
  %v1003 = vmul.f32 %v998, %v1001
  %v1004 = vsel %vm830, %v1003, 0.0
  %1005 = vadd.xlane.f32.xlu0 %v1004
  %v1006 = vpop.xlane.xlu0 %1005
  %v1007 = vld [vmem:[#allocation3] sm:$0x1]
  %v1009 = vperm.slane %v1007, 0
  %v1011 = vadd.f32 %v1006, %v1009
  %vm1012 = vcmask 1024
  %1013 = vst.msk [vmem:[%s23] sm:$0x3] %vm1012, %v1011
  // Predicated region
  $region94: #{finbert_regressor_forward.1} parent=0 // pred_check
    _
  $region95: #{finbert_regressor_forward.1} parent=0 // pred_check_branch
    %1015 = sbr.rel (0) target = $region97
  $region96: #{finbert_regressor_forward.1} parent=0 // pred_region
    _
  $region97: #{finbert_regressor_forward.1} parent=0 // pred_fallthru
    _
  // Predicated region
  $region98: #{finbert_regressor_forward.1} parent=0 // pred_check
    _
  $region99: #{finbert_regressor_forward.1} parent=0 // pred_check_branch
    %1017 = sbr.rel (0) target = $region101
  $region100: #{finbert_regressor_forward.1} parent=0 // pred_region
    _
  $region101: #{finbert_regressor_forward.1} parent=0 // pred_fallthru
    _

</llo_original>
